<compile_context>
chip_gen: v5e
topology: v5e:2x2
jax: 0.10.0
libtpu: 0.0.40
codegen_flags: <defaults>
</compile_context>

<pallas_src>
import functools
import math

import jax
import jax.numpy as jnp
from jax.experimental import pallas as pl
from jax.experimental.pallas import tpu as pltpu


def _mab_kernel(x_ref, wqkv_ref, bqkv_ref, wo_ref, bo_ref, hm_ref, o_ref, *,
                num_heads, dim, seg, compute_dtype):
    """Fused MAB(X, X) for a block of Bb batch elements.

    x_ref:    (Bb, N, dx)
    wqkv_ref: (dx, 3*seg)   bqkv_ref: (1, 3*seg)
              (Q/K/V segments each padded to `seg` (128-aligned) lanes;
               K columns pre-scaled by 1/sqrt(dim) on the host.)
    wo_ref:   (dim, dim)    bo_ref:   (1, dim)
    hm_ref:   (num_heads*N, dim) block-diagonal head mask:
              hm[h*N + j, c] = 1.0 iff column c belongs to head h.
    o_ref:    (Bb, N, dim)
    """
    Bb, N, dx = x_ref.shape
    R = Bb * N
    hp = jax.lax.Precision.HIGHEST

    # Fused Q/K/V projection: one MXU matmul with a lane-tile-aligned 3*seg output.
    x2 = x_ref[...].reshape(R, dx).astype(compute_dtype)
    qkv = jnp.dot(x2, wqkv_ref[...].astype(compute_dtype),
                  preferred_element_type=jnp.float32, precision=hp) + bqkv_ref[...]
    q2 = qkv[:, :dim]                        # (R, dim); also the residual branch
    k2 = qkv[:, seg:seg + dim]               # already scaled by 1/sqrt(dim)
    v2 = qkv[:, 2 * seg:2 * seg + dim]

    q3 = q2.reshape(Bb, N, dim)              # leading-dim reshapes only (cheap/safe)
    k3 = k2.reshape(Bb, N, dim)
    v3 = v2.reshape(Bb, N, dim)

    # Head-expanded K/V: (Bb, H*N, dim).  Replica h keeps only head h's columns,
    # so a single batched einsum computes every head's logits / outputs at once.
    hm = hm_ref[...]
    k_exp = jnp.concatenate([k3] * num_heads, axis=1) * hm[None]
    v_exp = jnp.concatenate([v3] * num_heads, axis=1) * hm[None]

    # All-head logits: lanes [h*N:(h+1)*N] of the last axis are head h's keys.
    logits = jnp.einsum("bqd,bkd->bqk", q3.astype(compute_dtype),
                        k_exp.astype(compute_dtype),
                        preferred_element_type=jnp.float32,
                        precision=hp)                          # (Bb, N, H*N)

    # Per-head softmax stabilised with the global (all-head) row max: softmax is
    # shift-invariant per head, so using the global max is exact and stable.
    m = jnp.max(logits, axis=-1, keepdims=True)
    p = jnp.exp(logits - m)                                    # (Bb, N, H*N)

    # Deferred normalisation: per-head denominators broadcast onto that head's
    # output columns via one small matmul against the head mask.
    denom = jnp.dot(p.reshape(R, num_heads * N), hm,
                    preferred_element_type=jnp.float32, precision=hp)   # (R, dim)
    attn = jnp.einsum("bqk,bkd->bqd", p.astype(compute_dtype),
                      v_exp.astype(compute_dtype),
                      preferred_element_type=jnp.float32,
                      precision=hp)                             # (Bb, N, dim)
    attn = attn.reshape(R, dim) / denom                         # exact divide

    # residual=True, ln=Identity, dropout=Identity.
    o = q2 + attn
    o = o + jax.nn.relu(
        jnp.dot(o.astype(compute_dtype), wo_ref[...].astype(compute_dtype),
                preferred_element_type=jnp.float32, precision=hp) + bo_ref[...])
    o_ref[...] = o.reshape(Bb, N, dim).astype(o_ref.dtype)


def sab_forward(X, params, *, num_heads=4, batch_block=16,
                compute_dtype=jnp.float32):
    """SAB(X) = MAB(X, X).  X: (B, N, dx) -> (B, N, dim)."""
    B, N, dx = X.shape
    dim = params["wq"].shape[1]
    assert dim % num_heads == 0
    hd = dim // num_heads

    # Pack Q/K/V params into one slab.  Each segment is zero-padded to a 128-lane
    # boundary so the in-kernel q/k/v slices are vreg aligned, and the 1/sqrt(dim)
    # logits scale is folded into the K columns (exact up to f32 rounding).
    seg = ((dim + 127) // 128) * 128
    scale = 1.0 / math.sqrt(dim)

    def pad_seg(a):
        return jnp.pad(a, ((0, 0), (0, seg - dim)))

    wqkv = jnp.concatenate(
        [pad_seg(params["wq"]), pad_seg(params["wk"] * scale), pad_seg(params["wv"])],
        axis=1)                                                # (dx, 3*seg)
    bqkv = jnp.concatenate(
        [pad_seg(params["bq"]), pad_seg(params["bk"] * scale), pad_seg(params["bv"])],
        axis=1)                                                # (1, 3*seg)
    wo, bo = params["wo"], params["bo"]

    # Block-diagonal head mask: hm[h*N + j, c] = 1 iff column c belongs to head h.
    # Used for head-expanded K/V and for the per-head softmax denominators.
    row_head = jnp.arange(num_heads * N, dtype=jnp.int32) // N
    col_head = jnp.arange(dim, dtype=jnp.int32) // hd
    head_mask = (row_head[:, None] == col_head[None, :]).astype(jnp.float32)

    # Batch blocking: always >= 2 grid steps when B >= 2 (megacore sharding and
    # input/output double buffering); pad B to a multiple of Bb instead of falling
    # back to a single whole-batch block.
    Bb = max(1, min(batch_block, -(-B // 2)))
    G = -(-B // Bb)
    B_pad = G * Bb
    if B_pad != B:
        X = jnp.pad(X, ((0, B_pad - B), (0, 0), (0, 0)))

    R_tot = B_pad * N
    flops = (2 * R_tot * dx * 3 * seg                      # fused QKV projection
             + 2 * 2 * R_tot * (num_heads * N) * dim       # logits + P @ V
             + 2 * R_tot * (num_heads * N) * dim           # per-head denominators
             + 2 * R_tot * dim * dim)                      # output projection
    cost = pl.CostEstimate(
        flops=flops,
        transcendentals=R_tot * num_heads * N,             # exp in softmax
        bytes_accessed=4 * (R_tot * dx + R_tot * dim + wqkv.size + bqkv.size
                            + wo.size + bo.size + head_mask.size))

    kernel = functools.partial(_mab_kernel, num_heads=num_heads, dim=dim,
                               seg=seg, compute_dtype=compute_dtype)

    out = pl.pallas_call(
        kernel,
        out_shape=jax.ShapeDtypeStruct((B_pad, N, dim), jnp.float32),
        grid=(G,),
        in_specs=[
            pl.BlockSpec((Bb, N, dx), lambda i: (i, 0, 0)),       # X (batch-blocked)
            # Constant index maps: Pallas does not re-DMA a block whose index is
            # unchanged between consecutive grid steps, so the tiny weight slabs
            # stay VMEM-resident across the whole grid.
            pl.BlockSpec((dx, 3 * seg), lambda i: (0, 0)),        # packed W_qkv
            pl.BlockSpec((1, 3 * seg), lambda i: (0, 0)),         # packed b_qkv
            pl.BlockSpec((dim, dim), lambda i: (0, 0)),           # W_o
            pl.BlockSpec((1, dim), lambda i: (0, 0)),             # b_o
            pl.BlockSpec((num_heads * N, dim), lambda i: (0, 0)),  # head mask
        ],
        out_specs=pl.BlockSpec((Bb, N, dim), lambda i: (i, 0, 0)),
        compiler_params=pltpu.CompilerParams(
            dimension_semantics=("parallel",),
            vmem_limit_bytes=32 * 1024 * 1024),
        cost_estimate=cost,
    )(X, wqkv, bqkv, wo, bo, head_mask)

    return out[:B] if B_pad != B else out


# ------------------------- parameter construction -------------------------

def _init_linear(key, d_in, d_out):
    kw, kb = jax.random.split(key)
    bound = 1.0 / math.sqrt(d_in)
    w = jax.random.uniform(kw, (d_in, d_out), jnp.float32, -bound, bound)
    b = jax.random.uniform(kb, (1, d_out), jnp.float32, -bound, bound)
    return w, b


def init_sab_params(key, dim_X, dim):
    """Parameters of SAB(dim_X, dim) == MAB(dim_X, dim_X, dim).

    Linear weights are stored as (in_dim, out_dim): y = x @ W + b."""
    ks = jax.random.split(key, 4)
    wq, bq = _init_linear(ks[0], dim_X, dim)
    wk, bk = _init_linear(ks[1], dim_X, dim)
    wv, bv = _init_linear(ks[2], dim_X, dim)
    wo, bo = _init_linear(ks[3], dim, dim)
    return dict(wq=wq, bq=bq, wk=wk, bk=bk, wv=wv, bv=bv, wo=wo, bo=bo)


# --------------------------- pure-JAX reference ---------------------------

def _mab_ref(X, Y, p, num_heads):
    with jax.default_matmul_precision("highest"):
        Q = X @ p["wq"] + p["bq"]
        K = Y @ p["wk"] + p["bk"]
        V = Y @ p["wv"] + p["bv"]
        dim = Q.shape[-1]
        Q_ = jnp.concatenate(jnp.split(Q, num_heads, axis=-1), axis=0)
        K_ = jnp.concatenate(jnp.split(K, num_heads, axis=-1), axis=0)
        V_ = jnp.concatenate(jnp.split(V, num_heads, axis=-1), axis=0)
        A = jax.nn.softmax(
            jnp.einsum("bqd,bkd->bqk", Q_, K_) / math.sqrt(dim), axis=-1)
        attn = jnp.concatenate(
            jnp.split(jnp.einsum("bqk,bkd->bqd", A, V_), num_heads, axis=0), axis=-1)
        O = Q + attn
        O = O + jax.nn.relu(O @ p["wo"] + p["bo"])
    return O


def _sab_ref(X, p, num_heads):
    return _mab_ref(X, X, p, num_heads)


# ---------------------------------- main ----------------------------------

if __name__ == "__main__":
    B, N = 2, 16
    dim_X, dim = 8, 32
    num_heads = 4

    key = jax.random.PRNGKey(0)
    kx, kp = jax.random.split(key)
    X = jax.random.normal(kx, (B, N, dim_X), jnp.float32)
    params = init_sab_params(kp, dim_X, dim)

    out = sab_forward(X, params, num_heads=num_heads)
    out = jax.block_until_ready(out)

    ref = _sab_ref(X, params, num_heads)
    assert out.shape == (B, N, dim)
    err = float(jnp.max(jnp.abs(out - ref)))
    # Exact softmax divide (no approx reciprocal) + HIGHEST-precision matmuls on
    # both sides: agreement is ~1e-5; 1e-3 leaves margin across TPU generations.
    assert jnp.allclose(out, ref, atol=1e-3, rtol=1e-3), err

    print("KERNEL_OK")
</pallas_src>

<mosaic_0001>
module attributes {stable_mosaic.version = 11 : i64} {
  func.func @_mab_kernel(%arg0: i32, %arg1: memref<1x16x8xf32, #tpu.memory_space<vmem>>, %arg2: memref<8x384xf32, #tpu.memory_space<vmem>>, %arg3: memref<1x384xf32, #tpu.memory_space<vmem>>, %arg4: memref<32x32xf32, #tpu.memory_space<vmem>>, %arg5: memref<1x32xf32, #tpu.memory_space<vmem>>, %arg6: memref<64x32xf32, #tpu.memory_space<vmem>>, %arg7: memref<1x16x32xf32, #tpu.memory_space<vmem>>) attributes {dimension_semantics = [#tpu.dimension_semantics<parallel>], iteration_bounds = array<i64: 2>, scalar_prefetch = 0 : i64, scratch_operands = 0 : i64, tpu.core_type = #tpu.core_type<tc>, window_params = [{transform_indices = @transform_0, window_bounds = array<i64: 1, 16, 8>}, {pipeline_mode = #tpu.pipeline_mode<synchronous>, transform_indices = @transform_1, window_bounds = array<i64: 8, 384>}, {pipeline_mode = #tpu.pipeline_mode<synchronous>, transform_indices = @transform_2, window_bounds = array<i64: 1, 384>}, {pipeline_mode = #tpu.pipeline_mode<synchronous>, transform_indices = @transform_3, window_bounds = array<i64: 32, 32>}, {pipeline_mode = #tpu.pipeline_mode<synchronous>, transform_indices = @transform_4, window_bounds = array<i64: 1, 32>}, {pipeline_mode = #tpu.pipeline_mode<synchronous>, transform_indices = @transform_5, window_bounds = array<i64: 64, 32>}, {transform_indices = @transform_6, window_bounds = array<i64: 1, 16, 32>}]} {
    %c0 = arith.constant 0 : index
    %c0_0 = arith.constant 0 : index
    %c0_1 = arith.constant 0 : index
    %0 = vector.load %arg1[%c0, %c0_0, %c0_1] : memref<1x16x8xf32, #tpu.memory_space<vmem>>, vector<1x16x8xf32>
    %1 = vector.shape_cast %0 : vector<1x16x8xf32> to vector<16x8xf32>
    %c0_2 = arith.constant 0 : index
    %c0_3 = arith.constant 0 : index
    %2 = vector.load %arg2[%c0_2, %c0_3] : memref<8x384xf32, #tpu.memory_space<vmem>>, vector<8x384xf32>
    %cst = arith.constant dense<0.000000e+00> : vector<16x384xf32>
    %3 = tpu.matmul %1, %2, %cst {dimension_numbers = #tpu.dot_dimension_numbers<[1], [0], [0], [1], [0, 0, 1, 1], [], []>, precision = #tpu.contract_precision<fp32>} : vector<16x8xf32>, vector<8x384xf32>, vector<16x384xf32> -> vector<16x384xf32>
    %c0_4 = arith.constant 0 : index
    %c0_5 = arith.constant 0 : index
    %4 = vector.load %arg3[%c0_4, %c0_5] : memref<1x384xf32, #tpu.memory_space<vmem>>, vector<1x384xf32>
    %5 = vector.broadcast %4 : vector<1x384xf32> to vector<16x384xf32>
    %6 = arith.addf %3, %5 : vector<16x384xf32>
    %7 = vector.extract_strided_slice %6 {offsets = [0, 0], sizes = [16, 32], strides = [1, 1]} : vector<16x384xf32> to vector<16x32xf32>
    %8 = vector.extract_strided_slice %6 {offsets = [0, 128], sizes = [16, 32], strides = [1, 1]} : vector<16x384xf32> to vector<16x32xf32>
    %9 = vector.extract_strided_slice %6 {offsets = [0, 256], sizes = [16, 32], strides = [1, 1]} : vector<16x384xf32> to vector<16x32xf32>
    %10 = vector.shape_cast %7 : vector<16x32xf32> to vector<1x16x32xf32>
    %11 = vector.shape_cast %8 : vector<16x32xf32> to vector<1x16x32xf32>
    %12 = vector.shape_cast %9 : vector<16x32xf32> to vector<1x16x32xf32>
    %c0_6 = arith.constant 0 : index
    %c0_7 = arith.constant 0 : index
    %13 = vector.load %arg6[%c0_6, %c0_7] : memref<64x32xf32, #tpu.memory_space<vmem>>, vector<64x32xf32>
    %14 = tpu.concatenate %11, %11, %11, %11 in 1 : vector<1x16x32xf32>, vector<1x16x32xf32>, vector<1x16x32xf32>, vector<1x16x32xf32> -> vector<1x64x32xf32>
    %15 = vector.shape_cast %13 : vector<64x32xf32> to vector<1x64x32xf32>
    %16 = arith.mulf %14, %15 : vector<1x64x32xf32>
    %17 = tpu.concatenate %12, %12, %12, %12 in 1 : vector<1x16x32xf32>, vector<1x16x32xf32>, vector<1x16x32xf32>, vector<1x16x32xf32> -> vector<1x64x32xf32>
    %18 = vector.shape_cast %13 : vector<64x32xf32> to vector<1x64x32xf32>
    %19 = arith.mulf %17, %18 : vector<1x64x32xf32>
    "tpu.trace_start"() <{level = 10 : i32, message = "bqd,bkd->bqk"}> : () -> ()
    %cst_8 = arith.constant dense<0.000000e+00> : vector<1x16x64xf32>
    %20 = tpu.matmul %10, %16, %cst_8 {dimension_numbers = #tpu.dot_dimension_numbers<[2], [2], [1], [1], [0, 0, 0, 1, 1, 1], [0], [0]>, precision = #tpu.contract_precision<fp32>} : vector<1x16x32xf32>, vector<1x64x32xf32>, vector<1x16x64xf32> -> vector<1x16x64xf32>
    "tpu.trace_stop"() : () -> ()
    %cst_9 = arith.constant dense<0xFF800000> : vector<1x16xf32>
    %21 = vector.multi_reduction <maximumf>, %20, %cst_9 [2] : vector<1x16x64xf32> to vector<1x16xf32>
    %22 = vector.shape_cast %21 : vector<1x16xf32> to vector<1x16x1xf32>
    %23 = vector.broadcast %22 : vector<1x16x1xf32> to vector<1x16x64xf32>
    %24 = arith.subf %20, %23 : vector<1x16x64xf32>
    %25 = math.exp %24 : vector<1x16x64xf32>
    %26 = vector.shape_cast %25 : vector<1x16x64xf32> to vector<16x64xf32>
    %cst_10 = arith.constant dense<0.000000e+00> : vector<16x32xf32>
    %27 = tpu.matmul %26, %13, %cst_10 {dimension_numbers = #tpu.dot_dimension_numbers<[1], [0], [0], [1], [0, 0, 1, 1], [], []>, precision = #tpu.contract_precision<fp32>} : vector<16x64xf32>, vector<64x32xf32>, vector<16x32xf32> -> vector<16x32xf32>
    "tpu.trace_start"() <{level = 10 : i32, message = "bqk,bkd->bqd"}> : () -> ()
    %cst_11 = arith.constant dense<0.000000e+00> : vector<1x16x32xf32>
    %28 = tpu.matmul %25, %19, %cst_11 {dimension_numbers = #tpu.dot_dimension_numbers<[2], [1], [1], [2], [0, 0, 0, 1, 1, 2], [0], [0]>, precision = #tpu.contract_precision<fp32>} : vector<1x16x64xf32>, vector<1x64x32xf32>, vector<1x16x32xf32> -> vector<1x16x32xf32>
    "tpu.trace_stop"() : () -> ()
    %29 = vector.shape_cast %28 : vector<1x16x32xf32> to vector<16x32xf32>
    %30 = arith.divf %29, %27 : vector<16x32xf32>
    %31 = arith.addf %7, %30 : vector<16x32xf32>
    %c0_12 = arith.constant 0 : index
    %c0_13 = arith.constant 0 : index
    %32 = vector.load %arg4[%c0_12, %c0_13] : memref<32x32xf32, #tpu.memory_space<vmem>>, vector<32x32xf32>
    %cst_14 = arith.constant dense<0.000000e+00> : vector<16x32xf32>
    %33 = tpu.matmul %31, %32, %cst_14 {dimension_numbers = #tpu.dot_dimension_numbers<[1], [0], [0], [1], [0, 0, 1, 1], [], []>, precision = #tpu.contract_precision<fp32>} : vector<16x32xf32>, vector<32x32xf32>, vector<16x32xf32> -> vector<16x32xf32>
    %c0_15 = arith.constant 0 : index
    %c0_16 = arith.constant 0 : index
    %34 = vector.load %arg5[%c0_15, %c0_16] : memref<1x32xf32, #tpu.memory_space<vmem>>, vector<1x32xf32>
    %35 = vector.broadcast %34 : vector<1x32xf32> to vector<16x32xf32>
    %36 = arith.addf %33, %35 : vector<16x32xf32>
    %cst_17 = arith.constant 0.000000e+00 : f32
    %37 = vector.broadcast %cst_17 : f32 to vector<16x32xf32>
    %38 = arith.maximumf %36, %37 : vector<16x32xf32>
    %39 = arith.addf %31, %38 : vector<16x32xf32>
    %40 = vector.shape_cast %39 : vector<16x32xf32> to vector<1x16x32xf32>
    %c0_18 = arith.constant 0 : index
    %c0_19 = arith.constant 0 : index
    %c0_20 = arith.constant 0 : index
    %41 = vector.load %arg7[%c0_18, %c0_19, %c0_20] : memref<1x16x32xf32, #tpu.memory_space<vmem>>, vector<1x16x32xf32>
    tpu.vector_store %arg7[%c0_18, %c0_19, %c0_20], %40 {strides = array<i32>} : memref<1x16x32xf32, #tpu.memory_space<vmem>>, vector<1x16x32xf32>,
    return
  }
  func.func @transform_0(%arg0: i32) -> (i32, i32, i32) {
    %c0_i32 = arith.constant 0 : i32
    %c0_i32_0 = arith.constant 0 : i32
    %c0_i32_1 = arith.constant 0 : i32
    return %arg0, %c0_i32, %c0_i32_0 : i32, i32, i32
  }
  func.func @transform_1(%arg0: i32) -> (i32, i32) {
    %c0_i32 = arith.constant 0 : i32
    %c0_i32_0 = arith.constant 0 : i32
    %c0_i32_1 = arith.constant 0 : i32
    return %c0_i32, %c0_i32_0 : i32, i32
  }
  func.func @transform_2(%arg0: i32) -> (i32, i32) {
    %c0_i32 = arith.constant 0 : i32
    %c0_i32_0 = arith.constant 0 : i32
    %c0_i32_1 = arith.constant 0 : i32
    return %c0_i32, %c0_i32_0 : i32, i32
  }
  func.func @transform_3(%arg0: i32) -> (i32, i32) {
    %c0_i32 = arith.constant 0 : i32
    %c0_i32_0 = arith.constant 0 : i32
    %c0_i32_1 = arith.constant 0 : i32
    return %c0_i32, %c0_i32_0 : i32, i32
  }
  func.func @transform_4(%arg0: i32) -> (i32, i32) {
    %c0_i32 = arith.constant 0 : i32
    %c0_i32_0 = arith.constant 0 : i32
    %c0_i32_1 = arith.constant 0 : i32
    return %c0_i32, %c0_i32_0 : i32, i32
  }
  func.func @transform_5(%arg0: i32) -> (i32, i32) {
    %c0_i32 = arith.constant 0 : i32
    %c0_i32_0 = arith.constant 0 : i32
    %c0_i32_1 = arith.constant 0 : i32
    return %c0_i32, %c0_i32_0 : i32, i32
  }
  func.func @transform_6(%arg0: i32) -> (i32, i32, i32) {
    %c0_i32 = arith.constant 0 : i32
    %c0_i32_0 = arith.constant 0 : i32
    %c0_i32_1 = arith.constant 0 : i32
    return %arg0, %c0_i32, %c0_i32_0 : i32, i32, i32
  }
}

</mosaic_0001>

<llo_original>
// kernel: tpu_custom_call.1
$region0: #{tpu_custom_call.1}
  #allocation0 [shape = 'u32[]', space=smem, size = 0x4, offset = 0x4, fixed_abs, tag = 'smem constant byte address 0x4 - core index']
  #allocation1 [shape = 'u32[72,128]{1,0:T(1,128)}', space=vmem, size = 0x9000, scoped, tag = 'internal scratch']
  %s0 = inlined_call_operand.vmem [shape: f32[2,16,8], index: 0, kind: input, shape index: {}]
  %s1 = inlined_call_operand.vmem [shape: f32[8,384], index: 1, kind: input, shape index: {}]
  %s2 = inlined_call_operand.vmem [shape: f32[1,384], index: 2, kind: input, shape index: {}]
  %s3 = inlined_call_operand.vmem [shape: f32[32,32], index: 3, kind: input, shape index: {}]
  %s4 = inlined_call_operand.vmem [shape: f32[1,32], index: 4, kind: input, shape index: {}]
  %s5 = inlined_call_operand.vmem [shape: f32[64,32], index: 5, kind: input, shape index: {}]
  %s6 = inlined_call_operand.hbm [shape: f32[2,16,32], index: 6, kind: output, shape index: {}]
  %s7 = sld [smem:[#allocation0]]
  $region57: #{tpu_custom_call.1} parent=0
    _
  %s9 = ssub.s32 1, %s7
  %s10 = scalar_select 0, %s9, %s7
  $region1: #{tpu_custom_call.1} parent=0
    #allocation2 [shape = 'u8[16384]{0}', space=vmem, size = 0x4000, scoped, tag = 'output window, operand 0']
    #allocation3 [shape = 's32[2]{0}', space=sflag, size = 0x8, scoped, tag = 'scoped memory for tpu_custom_call.1']
    %11 = vsyncpa [#allocation3], 0
    %s12 = scalar_lea.sflag [#allocation3], 1
    %13 = vsyncpa %s12, 0
    loop: start=0, step=1, limit=4
    $region2: #{tpu_custom_call.1} parent=1 // loop_pre_header
      _
    $region3: #{tpu_custom_call.1} parent=1 // loop_header
      %s15 = sphi 0, %s19
      %p16 = scmp.ge.s32.totalorder %s15, 4
      %s25 = sphi 0, %s27
      %s28 = sphi 0, %s25
      %s29 = sphi 0, %s28
      %s45 = sphi 0, %s29
      %s49 = sphi 0, %s49
      %s51 = sphi 0, %s49
      %s52 = sphi 0, %s51
      %s66 = sphi 0, %s52
      %s70 = sphi 0, %s70
      %s72 = sphi 0, %s70
      %s73 = sphi 0, %s72
      %s87 = sphi 0, %s73
      %s91 = sphi 0, %s91
      %s93 = sphi 0, %s91
      %s94 = sphi 0, %s93
      %s108 = sphi 0, %s94
      %s112 = sphi 0, %s112
      %s114 = sphi 0, %s112
      %s115 = sphi 0, %s114
      %s129 = sphi 0, %s115
      %s133 = sphi 0, %s133
      %s135 = sphi 0, %s133
      %s136 = sphi 0, %s135
      %s150 = sphi 0, %s136
      %s156 = sphi 0, %s158
      %s159 = sphi 0, %s156
      %s160 = sphi 0, %s159
      %s176 = sphi 0, %s160
    $region4: #{tpu_custom_call.1} parent=1 // loop_header_branch
      %18 = sbr.rel (%p16) target = $region8
    $region5: #{tpu_custom_call.1} parent=1 // loop_body
      %s20 = ssub.s32 %s15, 1
      %s21 = ssub.s32 %s15, 2
      %s22 = sadd.s32 %s15, 1
      %s23 = ssub.s32 %s15, %s22
      %p24 = scmp.eq.s32.totalorder %s23, 0
      %s26 = sadd.s32 %s25, 1
      %s27 = scalar_select %p24, %s25, %s26
      %p30 = pneg %p24
      %p31 = scmp.eq.s32.totalorder %s15, 1
      %p32 = por %p30, %p31
      %p33 = scmp.ne.s32.totalorder %s25, %s28
      %p34 = scmp.eq.s32.totalorder %s15, 0
      %p35 = por %p33, %p34
      %p36 = scmp.ne.s32.totalorder %s25, %s28
      %p37 = scmp.eq.s32.totalorder %s20, 1
      %p38 = por %p36, %p37
      %p39 = scmp.ne.s32.totalorder %s28, %s29
      %p40 = scmp.eq.s32.totalorder %s20, 0
      %p41 = por %p39, %p40
      %p42 = scmp.ne.s32.totalorder %s28, %s29
      %p43 = scmp.eq.s32.totalorder %s21, 1
      %p44 = por %p42, %p43
      %p46 = scmp.ne.s32.totalorder %s29, %s45
      %p47 = scmp.eq.s32.totalorder %s21, 0
      %p48 = por %p46, %p47
      %s50 = sadd.s32 %s49, 1
      %p53 = scmp.eq.s32.totalorder %s15, 1
      %p54 = scmp.ne.s32.totalorder %s49, %s51
      %p55 = scmp.eq.s32.totalorder %s15, 0
      %p56 = por %p54, %p55
      %p57 = scmp.ne.s32.totalorder %s49, %s51
      %p58 = scmp.eq.s32.totalorder %s20, 1
      %p59 = por %p57, %p58
      %p60 = scmp.ne.s32.totalorder %s51, %s52
      %p61 = scmp.eq.s32.totalorder %s20, 0
      %p62 = por %p60, %p61
      %p63 = scmp.ne.s32.totalorder %s51, %s52
      %p64 = scmp.eq.s32.totalorder %s21, 1
      %p65 = por %p63, %p64
      %p67 = scmp.ne.s32.totalorder %s52, %s66
      %p68 = scmp.eq.s32.totalorder %s21, 0
      %p69 = por %p67, %p68
      %s71 = sadd.s32 %s70, 1
      %p74 = scmp.eq.s32.totalorder %s15, 1
      %p75 = scmp.ne.s32.totalorder %s70, %s72
      %p76 = scmp.eq.s32.totalorder %s15, 0
      %p77 = por %p75, %p76
      %p78 = scmp.ne.s32.totalorder %s70, %s72
      %p79 = scmp.eq.s32.totalorder %s20, 1
      %p80 = por %p78, %p79
      %p81 = scmp.ne.s32.totalorder %s72, %s73
      %p82 = scmp.eq.s32.totalorder %s20, 0
      %p83 = por %p81, %p82
      %p84 = scmp.ne.s32.totalorder %s72, %s73
      %p85 = scmp.eq.s32.totalorder %s21, 1
      %p86 = por %p84, %p85
      %p88 = scmp.ne.s32.totalorder %s73, %s87
      %p89 = scmp.eq.s32.totalorder %s21, 0
      %p90 = por %p88, %p89
      %s92 = sadd.s32 %s91, 1
      %p95 = scmp.eq.s32.totalorder %s15, 1
      %p96 = scmp.ne.s32.totalorder %s91, %s93
      %p97 = scmp.eq.s32.totalorder %s15, 0
      %p98 = por %p96, %p97
      %p99 = scmp.ne.s32.totalorder %s91, %s93
      %p100 = scmp.eq.s32.totalorder %s20, 1
      %p101 = por %p99, %p100
      %p102 = scmp.ne.s32.totalorder %s93, %s94
      %p103 = scmp.eq.s32.totalorder %s20, 0
      %p104 = por %p102, %p103
      %p105 = scmp.ne.s32.totalorder %s93, %s94
      %p106 = scmp.eq.s32.totalorder %s21, 1
      %p107 = por %p105, %p106
      %p109 = scmp.ne.s32.totalorder %s94, %s108
      %p110 = scmp.eq.s32.totalorder %s21, 0
      %p111 = por %p109, %p110
      %s113 = sadd.s32 %s112, 1
      %p116 = scmp.eq.s32.totalorder %s15, 1
      %p117 = scmp.ne.s32.totalorder %s112, %s114
      %p118 = scmp.eq.s32.totalorder %s15, 0
      %p119 = por %p117, %p118
      %p120 = scmp.ne.s32.totalorder %s112, %s114
      %p121 = scmp.eq.s32.totalorder %s20, 1
      %p122 = por %p120, %p121
      %p123 = scmp.ne.s32.totalorder %s114, %s115
      %p124 = scmp.eq.s32.totalorder %s20, 0
      %p125 = por %p123, %p124
      %p126 = scmp.ne.s32.totalorder %s114, %s115
      %p127 = scmp.eq.s32.totalorder %s21, 1
      %p128 = por %p126, %p127
      %p130 = scmp.ne.s32.totalorder %s115, %s129
      %p131 = scmp.eq.s32.totalorder %s21, 0
      %p132 = por %p130, %p131
      %s134 = sadd.s32 %s133, 1
      %p137 = scmp.eq.s32.totalorder %s15, 1
      %p138 = scmp.ne.s32.totalorder %s133, %s135
      %p139 = scmp.eq.s32.totalorder %s15, 0
      %p140 = por %p138, %p139
      %p141 = scmp.ne.s32.totalorder %s133, %s135
      %p142 = scmp.eq.s32.totalorder %s20, 1
      %p143 = por %p141, %p142
      %p144 = scmp.ne.s32.totalorder %s135, %s136
      %p145 = scmp.eq.s32.totalorder %s20, 0
      %p146 = por %p144, %p145
      %p147 = scmp.ne.s32.totalorder %s135, %s136
      %p148 = scmp.eq.s32.totalorder %s21, 1
      %p149 = por %p147, %p148
      %p151 = scmp.ne.s32.totalorder %s136, %s150
      %p152 = scmp.eq.s32.totalorder %s21, 0
      %p153 = por %p151, %p152
      %s154 = ssub.s32 %s15, %s22
      %p155 = scmp.eq.s32.totalorder %s154, 0
      %s157 = sadd.s32 %s156, 1
      %s158 = scalar_select %p155, %s156, %s157
      %p161 = pneg %p155
      %p162 = scmp.eq.s32.totalorder %s15, 1
      %p163 = por %p161, %p162
      %p164 = scmp.ne.s32.totalorder %s156, %s159
      %p165 = scmp.eq.s32.totalorder %s15, 0
      %p166 = por %p164, %p165
      %p167 = scmp.ne.s32.totalorder %s156, %s159
      %p168 = scmp.eq.s32.totalorder %s20, 1
      %p169 = por %p167, %p168
      %p170 = scmp.ne.s32.totalorder %s159, %s160
      %p171 = scmp.eq.s32.totalorder %s20, 0
      %p172 = por %p170, %p171
      %p173 = scmp.ne.s32.totalorder %s159, %s160
      %p174 = scmp.eq.s32.totalorder %s21, 1
      %p175 = por %p173, %p174
      %p177 = scmp.ne.s32.totalorder %s160, %s176
      %p178 = scmp.eq.s32.totalorder %s21, 0
      %p179 = por %p177, %p178
      %p180 = scmp.le.s32.totalorder 1, %s15
      %p181 = scmp.lt.s32.totalorder %s15, 3
      %p182 = pnand %p180, %p181
      %p183 = pneg %p182
      // Predicated region
      $region9: #{tpu_custom_call.1} parent=5 // pred_check
        _
      $region10: #{tpu_custom_call.1} parent=5 // pred_check_branch
        %185 = sbr.rel (%p182) target = $region12
      $region11: #{tpu_custom_call.1} parent=5 // pred_region
        %s186 = ssub.s32 %s15, 1
        // Predicated region
        $region13: #{tpu_custom_call.1} parent=11 // pred_check
          %p187 = pneg %p62
        $region14: #{tpu_custom_call.1} parent=11 // pred_check_branch
          %189 = sbr.rel (%p187) target = $region16
        $region15: #{tpu_custom_call.1} parent=11 // pred_region
          _
        $region16: #{tpu_custom_call.1} parent=11 // pred_fallthru
          _
        // Predicated region
        $region17: #{tpu_custom_call.1} parent=11 // pred_check
          %p190 = pneg %p83
        $region18: #{tpu_custom_call.1} parent=11 // pred_check_branch
          %192 = sbr.rel (%p190) target = $region20
        $region19: #{tpu_custom_call.1} parent=11 // pred_region
          _
        $region20: #{tpu_custom_call.1} parent=11 // pred_fallthru
          _
        // Predicated region
        $region21: #{tpu_custom_call.1} parent=11 // pred_check
          %p193 = pneg %p104
        $region22: #{tpu_custom_call.1} parent=11 // pred_check_branch
          %195 = sbr.rel (%p193) target = $region24
        $region23: #{tpu_custom_call.1} parent=11 // pred_region
          _
        $region24: #{tpu_custom_call.1} parent=11 // pred_fallthru
          _
        // Predicated region
        $region25: #{tpu_custom_call.1} parent=11 // pred_check
          %p196 = pneg %p125
        $region26: #{tpu_custom_call.1} parent=11 // pred_check_branch
          %198 = sbr.rel (%p196) target = $region28
        $region27: #{tpu_custom_call.1} parent=11 // pred_region
          _
        $region28: #{tpu_custom_call.1} parent=11 // pred_fallthru
          _
        // Predicated region
        $region29: #{tpu_custom_call.1} parent=11 // pred_check
          %p199 = pneg %p146
        $region30: #{tpu_custom_call.1} parent=11 // pred_check_branch
          %201 = sbr.rel (%p199) target = $region32
        $region31: #{tpu_custom_call.1} parent=11 // pred_region
          _
        $region32: #{tpu_custom_call.1} parent=11 // pred_fallthru
          _
      $region12: #{tpu_custom_call.1} parent=5 // pred_fallthru
        _
      %p202 = scmp.lt.s32.totalorder %s15, 2
      // Predicated region
      $region33: #{tpu_custom_call.1} parent=5 // pred_check
        %p203 = pneg %p202
      $region34: #{tpu_custom_call.1} parent=5 // pred_check_branch
        %205 = sbr.rel (%p203) target = $region36
      $region35: #{tpu_custom_call.1} parent=5 // pred_region
        // Predicated region
        $region37: #{tpu_custom_call.1} parent=35 // pred_check
          %p206 = pneg %p35
        $region38: #{tpu_custom_call.1} parent=35 // pred_check_branch
          %208 = sbr.rel (%p206) target = $region40
        $region39: #{tpu_custom_call.1} parent=35 // pred_region
          %p209 = scmp.lt.s32.totalorder %s15, 1
          %s210 = scalar_select %p209, %s15, 1
          %s211 = smul.addr %s210, 2
          %s212 = smul.addr %s211, 8
          %s213 = scalar_lea.vmem %s0, %s212
        $region40: #{tpu_custom_call.1} parent=35 // pred_fallthru
          _
      $region36: #{tpu_custom_call.1} parent=5 // pred_fallthru
        _
      %p214 = scmp.le.s32.totalorder 1, %s15
      %p215 = scmp.lt.s32.totalorder %s15, 3
      %p216 = pnand %p214, %p215
      %p217 = pneg %p216
      // Predicated region
      $region41: #{tpu_custom_call.1} parent=5 // pred_check
        _
      $region42: #{tpu_custom_call.1} parent=5 // pred_check_branch
        %219 = sbr.rel (%p216) target = $region44
      $region43: #{tpu_custom_call.1} parent=5 // pred_region
        %s220 = ssub.s32 %s15, 1
        %p221 = scmp.lt.s32.totalorder %s20, 1
        %s222 = scalar_select %p221, %s20, 1
        %s223 = smul.addr %s222, 2
        %s224 = smul.addr %s223, 8
        %s225 = scalar_lea.vmem %s0, %s224
        %p226 = pneg %p41
        %p227 = pneg %p38
        %p228 = pneg %p62
        %p229 = pneg %p59
        %p230 = pneg %p83
        %p231 = pneg %p80
        %p232 = pneg %p104
        %p233 = pneg %p101
        %p234 = pneg %p125
        %p235 = pneg %p122
        %p236 = pneg %p146
        %p237 = pneg %p143
        %p238 = pneg %p172
        %p239 = pneg %p169
        %s240 = sand.u32 %s159, 1
        %s241 = scalar_lea.sflag [#allocation3], %s240
        %s242 = sand.u32 %s159, 1
        %s243 = smul.addr %s242, 16
        %s244 = scalar_lea.vmem [#allocation2], %s243
        %p245 = scmp.lt.s32.totalorder %s20, 1
        %s246 = scalar_select %p245, %s20, 1
        %s247 = smul.addr %s246, 2
        %s248 = smul.addr %s247, 8
        %s249 = scalar_lea.vmem %s0, %s248
        %v250 = vld [vmem:[%s249] sm:$0xff]
        %v251 = vld [vmem:[%s249 + $0x8] sm:$0xff]
        %v252 = vld [vmem:[%s1] sm:$0xff]
        %v253 = vld [vmem:[%s1 + $0x8] sm:$0xff]
        %v254 = vld [vmem:[%s1 + $0x10] sm:$0xff]
        %v255 = vld [vmem:[%s2] sm:$0x7]
        %v257 = vperm.slane %v255, 0
        %v258 = vperm.slane %v255, 1
        %v259 = vperm.slane %v255, 2
        %vm263 = vcmask 64512
        %v265 = vsel %vm263, %v250, 0
        %v268 = vsel %vm263, %v251, 0
        %270 = vmatpush.msra.mxu0 0.0
        %271 = vmatpush.msra.mxu0 0.0
        %272 = vmatpush.msra.mxu0 0.0
        %273 = vmatpush.msra.mxu0 0.0
        %274 = vmatpush.msra.mxu0 0.0
        %275 = vmatpush.msra.mxu0 0.0
        %276 = vmatpush.msra.mxu0 0.0
        %277 = vmatpush.msra.mxu0 0.0
        %278 = vmatpush.msra.mxu0 0.0
        %279 = vmatpush.msra.mxu0 0.0
        %280 = vmatpush.msra.mxu0 0.0
        %281 = vmatpush.msra.mxu0 0.0
        %282 = vmatpush.msra.mxu0 0.0
        %283 = vmatpush.msra.mxu0 0.0
        %284 = vmatpush.msra.mxu0 0.0
        %v285 = vand.u32 %v252, 4294901760
        %286 = vmatpush.msra.mxu0 %v285
        %v287 = vand.u32 %v265, 4294901760
        %v288 = vsub.f32 %v265, %v287
        %v289 = vand.u32 %v288, 4294901760
        %v290 = vsub.f32 %v288, %v289
        %v291 = vand.u32 %v290, 4294901760
        %292 = vmatmul.f32.gmra.mxu0 %v291
        %v293 = vpop.f32.mrf.mxu0
        %v294 = vadd.f32 %v257, %v293
        %v295 = vand.u32 %v268, 4294901760
        %v296 = vsub.f32 %v268, %v295
        %v297 = vand.u32 %v296, 4294901760
        %v298 = vsub.f32 %v296, %v297
        %v299 = vand.u32 %v298, 4294901760
        %300 = vmatmul.f32.gmra.mxu0 %v299
        %v301 = vpop.f32.mrf.mxu0
        %v302 = vadd.f32 %v257, %v301
        %303 = vdwg.mxu0
        %304 = vmatpush.msra.mxu0 0.0
        %305 = vmatpush.msra.mxu0 0.0
        %306 = vmatpush.msra.mxu0 0.0
        %307 = vmatpush.msra.mxu0 0.0
        %308 = vmatpush.msra.mxu0 0.0
        %309 = vmatpush.msra.mxu0 0.0
        %310 = vmatpush.msra.mxu0 0.0
        %311 = vmatpush.msra.mxu0 0.0
        %312 = vmatpush.msra.mxu0 0.0
        %313 = vmatpush.msra.mxu0 0.0
        %314 = vmatpush.msra.mxu0 0.0
        %315 = vmatpush.msra.mxu0 0.0
        %316 = vmatpush.msra.mxu0 0.0
        %317 = vmatpush.msra.mxu0 0.0
        %318 = vmatpush.msra.mxu0 0.0
        %v319 = vand.u32 %v252, 4294901760
        %v320 = vsub.f32 %v252, %v319
        %v321 = vand.u32 %v320, 4294901760
        %v322 = vsub.f32 %v320, %v321
        %v323 = vand.u32 %v322, 4294901760
        %324 = vmatpush.msra.mxu0 %v323
        %v325 = vand.u32 %v265, 4294901760
        %326 = vmatmul.f32.gmra.mxu0 %v325
        %v327 = vpop.f32.mrf.mxu0
        %v328 = vadd.f32 %v294, %v327
        %v329 = vand.u32 %v268, 4294901760
        %330 = vmatmul.f32.gmra.mxu0 %v329
        %v331 = vpop.f32.mrf.mxu0
        %v332 = vadd.f32 %v302, %v331
        %333 = vdwg.mxu0
        %334 = vmatpush.msra.mxu0 0.0
        %335 = vmatpush.msra.mxu0 0.0
        %336 = vmatpush.msra.mxu0 0.0
        %337 = vmatpush.msra.mxu0 0.0
        %338 = vmatpush.msra.mxu0 0.0
        %339 = vmatpush.msra.mxu0 0.0
        %340 = vmatpush.msra.mxu0 0.0
        %341 = vmatpush.msra.mxu0 0.0
        %342 = vmatpush.msra.mxu0 0.0
        %343 = vmatpush.msra.mxu0 0.0
        %344 = vmatpush.msra.mxu0 0.0
        %345 = vmatpush.msra.mxu0 0.0
        %346 = vmatpush.msra.mxu0 0.0
        %347 = vmatpush.msra.mxu0 0.0
        %348 = vmatpush.msra.mxu0 0.0
        %v349 = vand.u32 %v252, 4294901760
        %v350 = vsub.f32 %v252, %v349
        %351 = vmatpush.msra.mxu0 %v350
        %v352 = vand.u32 %v265, 4294901760
        %v353 = vsub.f32 %v265, %v352
        %354 = vmatmul.f32.gmra.mxu0 %v353
        %v355 = vpop.f32.mrf.mxu0
        %v356 = vadd.f32 %v328, %v355
        %v357 = vand.u32 %v268, 4294901760
        %v358 = vsub.f32 %v268, %v357
        %359 = vmatmul.f32.gmra.mxu0 %v358
        %v360 = vpop.f32.mrf.mxu0
        %v361 = vadd.f32 %v332, %v360
        %362 = vdwg.mxu0
        %363 = vmatpush.msra.mxu0 0.0
        %364 = vmatpush.msra.mxu0 0.0
        %365 = vmatpush.msra.mxu0 0.0
        %366 = vmatpush.msra.mxu0 0.0
        %367 = vmatpush.msra.mxu0 0.0
        %368 = vmatpush.msra.mxu0 0.0
        %369 = vmatpush.msra.mxu0 0.0
        %370 = vmatpush.msra.mxu0 0.0
        %371 = vmatpush.msra.mxu0 0.0
        %372 = vmatpush.msra.mxu0 0.0
        %373 = vmatpush.msra.mxu0 0.0
        %374 = vmatpush.msra.mxu0 0.0
        %375 = vmatpush.msra.mxu0 0.0
        %376 = vmatpush.msra.mxu0 0.0
        %377 = vmatpush.msra.mxu0 0.0
        %v378 = vand.u32 %v252, 4294901760
        %379 = vmatpush.msra.mxu0 %v378
        %v380 = vand.u32 %v265, 4294901760
        %v381 = vsub.f32 %v265, %v380
        %v382 = vand.u32 %v381, 4294901760
        %383 = vmatmul.f32.gmra.mxu0 %v382
        %v384 = vpop.f32.mrf.mxu0
        %v385 = vadd.f32 %v356, %v384
        %v386 = vand.u32 %v268, 4294901760
        %v387 = vsub.f32 %v268, %v386
        %v388 = vand.u32 %v387, 4294901760
        %389 = vmatmul.f32.gmra.mxu0 %v388
        %v390 = vpop.f32.mrf.mxu0
        %v391 = vadd.f32 %v361, %v390
        %392 = vdwg.mxu0
        %393 = vmatpush.msra.mxu0 0.0
        %394 = vmatpush.msra.mxu0 0.0
        %395 = vmatpush.msra.mxu0 0.0
        %396 = vmatpush.msra.mxu0 0.0
        %397 = vmatpush.msra.mxu0 0.0
        %398 = vmatpush.msra.mxu0 0.0
        %399 = vmatpush.msra.mxu0 0.0
        %400 = vmatpush.msra.mxu0 0.0
        %401 = vmatpush.msra.mxu0 0.0
        %402 = vmatpush.msra.mxu0 0.0
        %403 = vmatpush.msra.mxu0 0.0
        %404 = vmatpush.msra.mxu0 0.0
        %405 = vmatpush.msra.mxu0 0.0
        %406 = vmatpush.msra.mxu0 0.0
        %407 = vmatpush.msra.mxu0 0.0
        %v408 = vand.u32 %v252, 4294901760
        %v409 = vsub.f32 %v252, %v408
        %v410 = vand.u32 %v409, 4294901760
        %411 = vmatpush.msra.mxu0 %v410
        %v412 = vand.u32 %v265, 4294901760
        %413 = vmatmul.f32.gmra.mxu0 %v412
        %v414 = vpop.f32.mrf.mxu0
        %v415 = vadd.f32 %v385, %v414
        %v416 = vand.u32 %v268, 4294901760
        %417 = vmatmul.f32.gmra.mxu0 %v416
        %v418 = vpop.f32.mrf.mxu0
        %v419 = vadd.f32 %v391, %v418
        %420 = vdwg.mxu0
        %421 = vmatpush.msra.mxu0 0.0
        %422 = vmatpush.msra.mxu0 0.0
        %423 = vmatpush.msra.mxu0 0.0
        %424 = vmatpush.msra.mxu0 0.0
        %425 = vmatpush.msra.mxu0 0.0
        %426 = vmatpush.msra.mxu0 0.0
        %427 = vmatpush.msra.mxu0 0.0
        %428 = vmatpush.msra.mxu0 0.0
        %429 = vmatpush.msra.mxu0 0.0
        %430 = vmatpush.msra.mxu0 0.0
        %431 = vmatpush.msra.mxu0 0.0
        %432 = vmatpush.msra.mxu0 0.0
        %433 = vmatpush.msra.mxu0 0.0
        %434 = vmatpush.msra.mxu0 0.0
        %435 = vmatpush.msra.mxu0 0.0
        %v436 = vand.u32 %v252, 4294901760
        %437 = vmatpush.msra.mxu0 %v436
        %v438 = vand.u32 %v265, 4294901760
        %439 = vmatmul.f32.gmra.mxu0 %v438
        %v440 = vpop.f32.mrf.mxu0
        %v441 = vadd.f32 %v415, %v440
        %v442 = vand.u32 %v268, 4294901760
        %443 = vmatmul.f32.gmra.mxu0 %v442
        %v444 = vpop.f32.mrf.mxu0
        %v445 = vadd.f32 %v419, %v444
        %446 = vdwg.mxu0
        %447 = vmatpush.msra.mxu0 0.0
        %448 = vmatpush.msra.mxu0 0.0
        %449 = vmatpush.msra.mxu0 0.0
        %450 = vmatpush.msra.mxu0 0.0
        %451 = vmatpush.msra.mxu0 0.0
        %452 = vmatpush.msra.mxu0 0.0
        %453 = vmatpush.msra.mxu0 0.0
        %454 = vmatpush.msra.mxu0 0.0
        %455 = vmatpush.msra.mxu0 0.0
        %456 = vmatpush.msra.mxu0 0.0
        %457 = vmatpush.msra.mxu0 0.0
        %458 = vmatpush.msra.mxu0 0.0
        %459 = vmatpush.msra.mxu0 0.0
        %460 = vmatpush.msra.mxu0 0.0
        %461 = vmatpush.msra.mxu0 0.0
        %v462 = vand.u32 %v253, 4294901760
        %463 = vmatpush.msra.mxu0 %v462
        %v464 = vand.u32 %v265, 4294901760
        %v465 = vsub.f32 %v265, %v464
        %v466 = vand.u32 %v465, 4294901760
        %v467 = vsub.f32 %v465, %v466
        %v468 = vand.u32 %v467, 4294901760
        %469 = vmatmul.f32.gmra.mxu0 %v468
        %v470 = vpop.f32.mrf.mxu0
        %v471 = vadd.f32 %v258, %v470
        %v472 = vand.u32 %v268, 4294901760
        %v473 = vsub.f32 %v268, %v472
        %v474 = vand.u32 %v473, 4294901760
        %v475 = vsub.f32 %v473, %v474
        %v476 = vand.u32 %v475, 4294901760
        %477 = vmatmul.f32.gmra.mxu0 %v476
        %v478 = vpop.f32.mrf.mxu0
        %v479 = vadd.f32 %v258, %v478
        %480 = vdwg.mxu0
        %481 = vmatpush.msra.mxu0 0.0
        %482 = vmatpush.msra.mxu0 0.0
        %483 = vmatpush.msra.mxu0 0.0
        %484 = vmatpush.msra.mxu0 0.0
        %485 = vmatpush.msra.mxu0 0.0
        %486 = vmatpush.msra.mxu0 0.0
        %487 = vmatpush.msra.mxu0 0.0
        %488 = vmatpush.msra.mxu0 0.0
        %489 = vmatpush.msra.mxu0 0.0
        %490 = vmatpush.msra.mxu0 0.0
        %491 = vmatpush.msra.mxu0 0.0
        %492 = vmatpush.msra.mxu0 0.0
        %493 = vmatpush.msra.mxu0 0.0
        %494 = vmatpush.msra.mxu0 0.0
        %495 = vmatpush.msra.mxu0 0.0
        %v496 = vand.u32 %v253, 4294901760
        %v497 = vsub.f32 %v253, %v496
        %v498 = vand.u32 %v497, 4294901760
        %v499 = vsub.f32 %v497, %v498
        %v500 = vand.u32 %v499, 4294901760
        %501 = vmatpush.msra.mxu0 %v500
        %v502 = vand.u32 %v265, 4294901760
        %503 = vmatmul.f32.gmra.mxu0 %v502
        %v504 = vpop.f32.mrf.mxu0
        %v505 = vadd.f32 %v471, %v504
        %v506 = vand.u32 %v268, 4294901760
        %507 = vmatmul.f32.gmra.mxu0 %v506
        %v508 = vpop.f32.mrf.mxu0
        %v509 = vadd.f32 %v479, %v508
        %510 = vdwg.mxu0
        %511 = vmatpush.msra.mxu0 0.0
        %512 = vmatpush.msra.mxu0 0.0
        %513 = vmatpush.msra.mxu0 0.0
        %514 = vmatpush.msra.mxu0 0.0
        %515 = vmatpush.msra.mxu0 0.0
        %516 = vmatpush.msra.mxu0 0.0
        %517 = vmatpush.msra.mxu0 0.0
        %518 = vmatpush.msra.mxu0 0.0
        %519 = vmatpush.msra.mxu0 0.0
        %520 = vmatpush.msra.mxu0 0.0
        %521 = vmatpush.msra.mxu0 0.0
        %522 = vmatpush.msra.mxu0 0.0
        %523 = vmatpush.msra.mxu0 0.0
        %524 = vmatpush.msra.mxu0 0.0
        %525 = vmatpush.msra.mxu0 0.0
        %v526 = vand.u32 %v253, 4294901760
        %v527 = vsub.f32 %v253, %v526
        %528 = vmatpush.msra.mxu0 %v527
        %v529 = vand.u32 %v265, 4294901760
        %v530 = vsub.f32 %v265, %v529
        %531 = vmatmul.f32.gmra.mxu0 %v530
        %v532 = vpop.f32.mrf.mxu0
        %v533 = vadd.f32 %v505, %v532
        %v534 = vand.u32 %v268, 4294901760
        %v535 = vsub.f32 %v268, %v534
        %536 = vmatmul.f32.gmra.mxu0 %v535
        %v537 = vpop.f32.mrf.mxu0
        %v538 = vadd.f32 %v509, %v537
        %539 = vdwg.mxu0
        %540 = vmatpush.msra.mxu0 0.0
        %541 = vmatpush.msra.mxu0 0.0
        %542 = vmatpush.msra.mxu0 0.0
        %543 = vmatpush.msra.mxu0 0.0
        %544 = vmatpush.msra.mxu0 0.0
        %545 = vmatpush.msra.mxu0 0.0
        %546 = vmatpush.msra.mxu0 0.0
        %547 = vmatpush.msra.mxu0 0.0
        %548 = vmatpush.msra.mxu0 0.0
        %549 = vmatpush.msra.mxu0 0.0
        %550 = vmatpush.msra.mxu0 0.0
        %551 = vmatpush.msra.mxu0 0.0
        %552 = vmatpush.msra.mxu0 0.0
        %553 = vmatpush.msra.mxu0 0.0
        %554 = vmatpush.msra.mxu0 0.0
        %v555 = vand.u32 %v253, 4294901760
        %556 = vmatpush.msra.mxu0 %v555
        %v557 = vand.u32 %v265, 4294901760
        %v558 = vsub.f32 %v265, %v557
        %v559 = vand.u32 %v558, 4294901760
        %560 = vmatmul.f32.gmra.mxu0 %v559
        %v561 = vpop.f32.mrf.mxu0
        %v562 = vadd.f32 %v533, %v561
        %v563 = vand.u32 %v268, 4294901760
        %v564 = vsub.f32 %v268, %v563
        %v565 = vand.u32 %v564, 4294901760
        %566 = vmatmul.f32.gmra.mxu0 %v565
        %v567 = vpop.f32.mrf.mxu0
        %v568 = vadd.f32 %v538, %v567
        %569 = vdwg.mxu0
        %570 = vmatpush.msra.mxu0 0.0
        %571 = vmatpush.msra.mxu0 0.0
        %572 = vmatpush.msra.mxu0 0.0
        %573 = vmatpush.msra.mxu0 0.0
        %574 = vmatpush.msra.mxu0 0.0
        %575 = vmatpush.msra.mxu0 0.0
        %576 = vmatpush.msra.mxu0 0.0
        %577 = vmatpush.msra.mxu0 0.0
        %578 = vmatpush.msra.mxu0 0.0
        %579 = vmatpush.msra.mxu0 0.0
        %580 = vmatpush.msra.mxu0 0.0
        %581 = vmatpush.msra.mxu0 0.0
        %582 = vmatpush.msra.mxu0 0.0
        %583 = vmatpush.msra.mxu0 0.0
        %584 = vmatpush.msra.mxu0 0.0
        %v585 = vand.u32 %v253, 4294901760
        %v586 = vsub.f32 %v253, %v585
        %v587 = vand.u32 %v586, 4294901760
        %588 = vmatpush.msra.mxu0 %v587
        %v589 = vand.u32 %v265, 4294901760
        %590 = vmatmul.f32.gmra.mxu0 %v589
        %v591 = vpop.f32.mrf.mxu0
        %v592 = vadd.f32 %v562, %v591
        %v593 = vand.u32 %v268, 4294901760
        %594 = vmatmul.f32.gmra.mxu0 %v593
        %v595 = vpop.f32.mrf.mxu0
        %v596 = vadd.f32 %v568, %v595
        %597 = vdwg.mxu0
        %598 = vmatpush.msra.mxu0 0.0
        %599 = vmatpush.msra.mxu0 0.0
        %600 = vmatpush.msra.mxu0 0.0
        %601 = vmatpush.msra.mxu0 0.0
        %602 = vmatpush.msra.mxu0 0.0
        %603 = vmatpush.msra.mxu0 0.0
        %604 = vmatpush.msra.mxu0 0.0
        %605 = vmatpush.msra.mxu0 0.0
        %606 = vmatpush.msra.mxu0 0.0
        %607 = vmatpush.msra.mxu0 0.0
        %608 = vmatpush.msra.mxu0 0.0
        %609 = vmatpush.msra.mxu0 0.0
        %610 = vmatpush.msra.mxu0 0.0
        %611 = vmatpush.msra.mxu0 0.0
        %612 = vmatpush.msra.mxu0 0.0
        %v613 = vand.u32 %v253, 4294901760
        %614 = vmatpush.msra.mxu0 %v613
        %v615 = vand.u32 %v265, 4294901760
        %616 = vmatmul.f32.gmra.mxu0 %v615
        %v617 = vpop.f32.mrf.mxu0
        %v618 = vadd.f32 %v592, %v617
        %v619 = vand.u32 %v268, 4294901760
        %620 = vmatmul.f32.gmra.mxu0 %v619
        %v621 = vpop.f32.mrf.mxu0
        %v622 = vadd.f32 %v596, %v621
        %623 = vdwg.mxu0
        %624 = vmatpush.msra.mxu0 0.0
        %625 = vmatpush.msra.mxu0 0.0
        %626 = vmatpush.msra.mxu0 0.0
        %627 = vmatpush.msra.mxu0 0.0
        %628 = vmatpush.msra.mxu0 0.0
        %629 = vmatpush.msra.mxu0 0.0
        %630 = vmatpush.msra.mxu0 0.0
        %631 = vmatpush.msra.mxu0 0.0
        %632 = vmatpush.msra.mxu0 0.0
        %633 = vmatpush.msra.mxu0 0.0
        %634 = vmatpush.msra.mxu0 0.0
        %635 = vmatpush.msra.mxu0 0.0
        %636 = vmatpush.msra.mxu0 0.0
        %637 = vmatpush.msra.mxu0 0.0
        %638 = vmatpush.msra.mxu0 0.0
        %v639 = vand.u32 %v254, 4294901760
        %640 = vmatpush.msra.mxu0 %v639
        %v641 = vand.u32 %v265, 4294901760
        %v642 = vsub.f32 %v265, %v641
        %v643 = vand.u32 %v642, 4294901760
        %v644 = vsub.f32 %v642, %v643
        %v645 = vand.u32 %v644, 4294901760
        %646 = vmatmul.f32.gmra.mxu0 %v645
        %v647 = vpop.f32.mrf.mxu0
        %v648 = vadd.f32 %v259, %v647
        %v649 = vand.u32 %v268, 4294901760
        %v650 = vsub.f32 %v268, %v649
        %v651 = vand.u32 %v650, 4294901760
        %v652 = vsub.f32 %v650, %v651
        %v653 = vand.u32 %v652, 4294901760
        %654 = vmatmul.f32.gmra.mxu0 %v653
        %v655 = vpop.f32.mrf.mxu0
        %v656 = vadd.f32 %v259, %v655
        %657 = vdwg.mxu0
        %658 = vmatpush.msra.mxu0 0.0
        %659 = vmatpush.msra.mxu0 0.0
        %660 = vmatpush.msra.mxu0 0.0
        %661 = vmatpush.msra.mxu0 0.0
        %662 = vmatpush.msra.mxu0 0.0
        %663 = vmatpush.msra.mxu0 0.0
        %664 = vmatpush.msra.mxu0 0.0
        %665 = vmatpush.msra.mxu0 0.0
        %666 = vmatpush.msra.mxu0 0.0
        %667 = vmatpush.msra.mxu0 0.0
        %668 = vmatpush.msra.mxu0 0.0
        %669 = vmatpush.msra.mxu0 0.0
        %670 = vmatpush.msra.mxu0 0.0
        %671 = vmatpush.msra.mxu0 0.0
        %672 = vmatpush.msra.mxu0 0.0
        %v673 = vand.u32 %v254, 4294901760
        %v674 = vsub.f32 %v254, %v673
        %v675 = vand.u32 %v674, 4294901760
        %v676 = vsub.f32 %v674, %v675
        %v677 = vand.u32 %v676, 4294901760
        %678 = vmatpush.msra.mxu0 %v677
        %v679 = vand.u32 %v265, 4294901760
        %680 = vmatmul.f32.gmra.mxu0 %v679
        %v681 = vpop.f32.mrf.mxu0
        %v682 = vadd.f32 %v648, %v681
        %v683 = vand.u32 %v268, 4294901760
        %684 = vmatmul.f32.gmra.mxu0 %v683
        %v685 = vpop.f32.mrf.mxu0
        %v686 = vadd.f32 %v656, %v685
        %687 = vdwg.mxu0
        %688 = vmatpush.msra.mxu0 0.0
        %689 = vmatpush.msra.mxu0 0.0
        %690 = vmatpush.msra.mxu0 0.0
        %691 = vmatpush.msra.mxu0 0.0
        %692 = vmatpush.msra.mxu0 0.0
        %693 = vmatpush.msra.mxu0 0.0
        %694 = vmatpush.msra.mxu0 0.0
        %695 = vmatpush.msra.mxu0 0.0
        %696 = vmatpush.msra.mxu0 0.0
        %697 = vmatpush.msra.mxu0 0.0
        %698 = vmatpush.msra.mxu0 0.0
        %699 = vmatpush.msra.mxu0 0.0
        %700 = vmatpush.msra.mxu0 0.0
        %701 = vmatpush.msra.mxu0 0.0
        %702 = vmatpush.msra.mxu0 0.0
        %v703 = vand.u32 %v254, 4294901760
        %v704 = vsub.f32 %v254, %v703
        %705 = vmatpush.msra.mxu0 %v704
        %v706 = vand.u32 %v265, 4294901760
        %v707 = vsub.f32 %v265, %v706
        %708 = vmatmul.f32.gmra.mxu0 %v707
        %v709 = vpop.f32.mrf.mxu0
        %v710 = vadd.f32 %v682, %v709
        %v711 = vand.u32 %v268, 4294901760
        %v712 = vsub.f32 %v268, %v711
        %713 = vmatmul.f32.gmra.mxu0 %v712
        %v714 = vpop.f32.mrf.mxu0
        %v715 = vadd.f32 %v686, %v714
        %716 = vdwg.mxu0
        %717 = vmatpush.msra.mxu0 0.0
        %718 = vmatpush.msra.mxu0 0.0
        %719 = vmatpush.msra.mxu0 0.0
        %720 = vmatpush.msra.mxu0 0.0
        %721 = vmatpush.msra.mxu0 0.0
        %722 = vmatpush.msra.mxu0 0.0
        %723 = vmatpush.msra.mxu0 0.0
        %724 = vmatpush.msra.mxu0 0.0
        %725 = vmatpush.msra.mxu0 0.0
        %726 = vmatpush.msra.mxu0 0.0
        %727 = vmatpush.msra.mxu0 0.0
        %728 = vmatpush.msra.mxu0 0.0
        %729 = vmatpush.msra.mxu0 0.0
        %730 = vmatpush.msra.mxu0 0.0
        %731 = vmatpush.msra.mxu0 0.0
        %v732 = vand.u32 %v254, 4294901760
        %733 = vmatpush.msra.mxu0 %v732
        %v734 = vand.u32 %v265, 4294901760
        %v735 = vsub.f32 %v265, %v734
        %v736 = vand.u32 %v735, 4294901760
        %737 = vmatmul.f32.gmra.mxu0 %v736
        %v738 = vpop.f32.mrf.mxu0
        %v739 = vadd.f32 %v710, %v738
        %v740 = vand.u32 %v268, 4294901760
        %v741 = vsub.f32 %v268, %v740
        %v742 = vand.u32 %v741, 4294901760
        %743 = vmatmul.f32.gmra.mxu0 %v742
        %v744 = vpop.f32.mrf.mxu0
        %v745 = vadd.f32 %v715, %v744
        %746 = vdwg.mxu0
        %747 = vmatpush.msra.mxu0 0.0
        %748 = vmatpush.msra.mxu0 0.0
        %749 = vmatpush.msra.mxu0 0.0
        %750 = vmatpush.msra.mxu0 0.0
        %751 = vmatpush.msra.mxu0 0.0
        %752 = vmatpush.msra.mxu0 0.0
        %753 = vmatpush.msra.mxu0 0.0
        %754 = vmatpush.msra.mxu0 0.0
        %755 = vmatpush.msra.mxu0 0.0
        %756 = vmatpush.msra.mxu0 0.0
        %757 = vmatpush.msra.mxu0 0.0
        %758 = vmatpush.msra.mxu0 0.0
        %759 = vmatpush.msra.mxu0 0.0
        %760 = vmatpush.msra.mxu0 0.0
        %761 = vmatpush.msra.mxu0 0.0
        %v762 = vand.u32 %v254, 4294901760
        %v763 = vsub.f32 %v254, %v762
        %v764 = vand.u32 %v763, 4294901760
        %765 = vmatpush.msra.mxu0 %v764
        %v766 = vand.u32 %v265, 4294901760
        %767 = vmatmul.f32.gmra.mxu0 %v766
        %v768 = vpop.f32.mrf.mxu0
        %v769 = vadd.f32 %v739, %v768
        %v770 = vand.u32 %v268, 4294901760
        %771 = vmatmul.f32.gmra.mxu0 %v770
        %v772 = vpop.f32.mrf.mxu0
        %v773 = vadd.f32 %v745, %v772
        %774 = vdwg.mxu0
        %775 = vmatpush.msra.mxu0 0.0
        %776 = vmatpush.msra.mxu0 0.0
        %777 = vmatpush.msra.mxu0 0.0
        %778 = vmatpush.msra.mxu0 0.0
        %779 = vmatpush.msra.mxu0 0.0
        %780 = vmatpush.msra.mxu0 0.0
        %781 = vmatpush.msra.mxu0 0.0
        %782 = vmatpush.msra.mxu0 0.0
        %783 = vmatpush.msra.mxu0 0.0
        %784 = vmatpush.msra.mxu0 0.0
        %785 = vmatpush.msra.mxu0 0.0
        %786 = vmatpush.msra.mxu0 0.0
        %787 = vmatpush.msra.mxu0 0.0
        %788 = vmatpush.msra.mxu0 0.0
        %789 = vmatpush.msra.mxu0 0.0
        %v790 = vand.u32 %v254, 4294901760
        %791 = vmatpush.msra.mxu0 %v790
        %v792 = vand.u32 %v265, 4294901760
        %793 = vmatmul.f32.gmra.mxu0 %v792
        %v794 = vpop.f32.mrf.mxu0
        %v795 = vadd.f32 %v769, %v794
        %v796 = vand.u32 %v268, 4294901760
        %797 = vmatmul.f32.gmra.mxu0 %v796
        %v798 = vpop.f32.mrf.mxu0
        %v799 = vadd.f32 %v773, %v798
        %800 = vdwg.mxu0
        %v801 = vld [vmem:[%s5] sm:$0xff]
        %v802 = vld [vmem:[%s5 + $0x8] sm:$0xff]
        %v803 = vld [vmem:[%s5 + $0x10] sm:$0xff]
        %v804 = vld [vmem:[%s5 + $0x18] sm:$0xff]
        %v805 = vld [vmem:[%s5 + $0x20] sm:$0xff]
        %v806 = vld [vmem:[%s5 + $0x28] sm:$0xff]
        %v807 = vld [vmem:[%s5 + $0x30] sm:$0xff]
        %v808 = vld [vmem:[%s5 + $0x38] sm:$0xff]
        %v809 = vmul.f32 %v618, %v801
        %v810 = vmul.f32 %v622, %v802
        %v811 = vmul.f32 %v618, %v803
        %v812 = vmul.f32 %v622, %v804
        %v813 = vmul.f32 %v618, %v805
        %v814 = vmul.f32 %v622, %v806
        %v815 = vmul.f32 %v618, %v807
        %v816 = vmul.f32 %v622, %v808
        %v817 = vmul.f32 %v795, %v801
        %v818 = vmul.f32 %v799, %v802
        %v819 = vmul.f32 %v795, %v803
        %v820 = vmul.f32 %v799, %v804
        %v821 = vmul.f32 %v795, %v805
        %v822 = vmul.f32 %v799, %v806
        %v823 = vmul.f32 %v795, %v807
        %v824 = vmul.f32 %v799, %v808
        %vm825 = vcmask 261120
        %v827 = vsel %vm825, %v441, 0
        %v830 = vsel %vm825, %v445, 0
        %v833 = vsel %vm825, %v809, 0
        %v836 = vsel %vm825, %v810, 0
        %v839 = vsel %vm825, %v811, 0
        %v842 = vsel %vm825, %v812, 0
        %v845 = vsel %vm825, %v813, 0
        %v848 = vsel %vm825, %v814, 0
        %v851 = vsel %vm825, %v815, 0
        %v854 = vsel %vm825, %v816, 0
        %856 = vmatpush.xpose.msra.mxu0 0.0
        %857 = vmatpush.xpose.msra.mxu0 0.0
        %858 = vmatpush.xpose.msra.mxu0 0.0
        %859 = vmatpush.xpose.msra.mxu0 0.0
        %860 = vmatpush.xpose.msra.mxu0 0.0
        %861 = vmatpush.xpose.msra.mxu0 0.0
        %862 = vmatpush.xpose.msra.mxu0 0.0
        %863 = vmatpush.xpose.msra.mxu0 0.0
        %v864 = vand.u32 %v854, 4294901760
        %865 = vmatpush.xpose.msra.mxu0 %v864
        %v866 = vand.u32 %v851, 4294901760
        %867 = vmatpush.xpose.msra.mxu0 %v866
        %v868 = vand.u32 %v848, 4294901760
        %869 = vmatpush.xpose.msra.mxu0 %v868
        %v870 = vand.u32 %v845, 4294901760
        %871 = vmatpush.xpose.msra.mxu0 %v870
        %v872 = vand.u32 %v842, 4294901760
        %873 = vmatpush.xpose.msra.mxu0 %v872
        %v874 = vand.u32 %v839, 4294901760
        %875 = vmatpush.xpose.msra.mxu0 %v874
        %v876 = vand.u32 %v836, 4294901760
        %877 = vmatpush.xpose.msra.mxu0 %v876
        %v878 = vand.u32 %v833, 4294901760
        %879 = vmatpush.xpose.msra.mxu0 %v878
        %v880 = vand.u32 %v827, 4294901760
        %v881 = vsub.f32 %v827, %v880
        %v882 = vand.u32 %v881, 4294901760
        %v883 = vsub.f32 %v881, %v882
        %v884 = vand.u32 %v883, 4294901760
        %885 = vmatmul.f32.gmra.mxu0 %v884
        %v886 = vpop.f32.mrf.mxu0
        %v887 = vadd.f32 0.0, %v886
        %v888 = vand.u32 %v830, 4294901760
        %v889 = vsub.f32 %v830, %v888
        %v890 = vand.u32 %v889, 4294901760
        %v891 = vsub.f32 %v889, %v890
        %v892 = vand.u32 %v891, 4294901760
        %893 = vmatmul.f32.gmra.mxu0 %v892
        %v894 = vpop.f32.mrf.mxu0
        %v895 = vadd.f32 0.0, %v894
        %896 = vdwg.mxu0
        %897 = vmatpush.xpose.msra.mxu0 0.0
        %898 = vmatpush.xpose.msra.mxu0 0.0
        %899 = vmatpush.xpose.msra.mxu0 0.0
        %900 = vmatpush.xpose.msra.mxu0 0.0
        %901 = vmatpush.xpose.msra.mxu0 0.0
        %902 = vmatpush.xpose.msra.mxu0 0.0
        %903 = vmatpush.xpose.msra.mxu0 0.0
        %904 = vmatpush.xpose.msra.mxu0 0.0
        %v905 = vand.u32 %v854, 4294901760
        %v906 = vsub.f32 %v854, %v905
        %v907 = vand.u32 %v906, 4294901760
        %v908 = vsub.f32 %v906, %v907
        %v909 = vand.u32 %v908, 4294901760
        %910 = vmatpush.xpose.msra.mxu0 %v909
        %v911 = vand.u32 %v851, 4294901760
        %v912 = vsub.f32 %v851, %v911
        %v913 = vand.u32 %v912, 4294901760
        %v914 = vsub.f32 %v912, %v913
        %v915 = vand.u32 %v914, 4294901760
        %916 = vmatpush.xpose.msra.mxu0 %v915
        %v917 = vand.u32 %v848, 4294901760
        %v918 = vsub.f32 %v848, %v917
        %v919 = vand.u32 %v918, 4294901760
        %v920 = vsub.f32 %v918, %v919
        %v921 = vand.u32 %v920, 4294901760
        %922 = vmatpush.xpose.msra.mxu0 %v921
        %v923 = vand.u32 %v845, 4294901760
        %v924 = vsub.f32 %v845, %v923
        %v925 = vand.u32 %v924, 4294901760
        %v926 = vsub.f32 %v924, %v925
        %v927 = vand.u32 %v926, 4294901760
        %928 = vmatpush.xpose.msra.mxu0 %v927
        %v929 = vand.u32 %v842, 4294901760
        %v930 = vsub.f32 %v842, %v929
        %v931 = vand.u32 %v930, 4294901760
        %v932 = vsub.f32 %v930, %v931
        %v933 = vand.u32 %v932, 4294901760
        %934 = vmatpush.xpose.msra.mxu0 %v933
        %v935 = vand.u32 %v839, 4294901760
        %v936 = vsub.f32 %v839, %v935
        %v937 = vand.u32 %v936, 4294901760
        %v938 = vsub.f32 %v936, %v937
        %v939 = vand.u32 %v938, 4294901760
        %940 = vmatpush.xpose.msra.mxu0 %v939
        %v941 = vand.u32 %v836, 4294901760
        %v942 = vsub.f32 %v836, %v941
        %v943 = vand.u32 %v942, 4294901760
        %v944 = vsub.f32 %v942, %v943
        %v945 = vand.u32 %v944, 4294901760
        %946 = vmatpush.xpose.msra.mxu0 %v945
        %v947 = vand.u32 %v833, 4294901760
        %v948 = vsub.f32 %v833, %v947
        %v949 = vand.u32 %v948, 4294901760
        %v950 = vsub.f32 %v948, %v949
        %v951 = vand.u32 %v950, 4294901760
        %952 = vmatpush.xpose.msra.mxu0 %v951
        %v953 = vand.u32 %v827, 4294901760
        %954 = vmatmul.f32.gmra.mxu0 %v953
        %v955 = vpop.f32.mrf.mxu0
        %v956 = vadd.f32 %v887, %v955
        %v957 = vand.u32 %v830, 4294901760
        %958 = vmatmul.f32.gmra.mxu0 %v957
        %v959 = vpop.f32.mrf.mxu0
        %v960 = vadd.f32 %v895, %v959
        %961 = vdwg.mxu0
        %962 = vmatpush.xpose.msra.mxu0 0.0
        %963 = vmatpush.xpose.msra.mxu0 0.0
        %964 = vmatpush.xpose.msra.mxu0 0.0
        %965 = vmatpush.xpose.msra.mxu0 0.0
        %966 = vmatpush.xpose.msra.mxu0 0.0
        %967 = vmatpush.xpose.msra.mxu0 0.0
        %968 = vmatpush.xpose.msra.mxu0 0.0
        %969 = vmatpush.xpose.msra.mxu0 0.0
        %v970 = vand.u32 %v854, 4294901760
        %v971 = vsub.f32 %v854, %v970
        %972 = vmatpush.xpose.msra.mxu0 %v971
        %v973 = vand.u32 %v851, 4294901760
        %v974 = vsub.f32 %v851, %v973
        %975 = vmatpush.xpose.msra.mxu0 %v974
        %v976 = vand.u32 %v848, 4294901760
        %v977 = vsub.f32 %v848, %v976
        %978 = vmatpush.xpose.msra.mxu0 %v977
        %v979 = vand.u32 %v845, 4294901760
        %v980 = vsub.f32 %v845, %v979
        %981 = vmatpush.xpose.msra.mxu0 %v980
        %v982 = vand.u32 %v842, 4294901760
        %v983 = vsub.f32 %v842, %v982
        %984 = vmatpush.xpose.msra.mxu0 %v983
        %v985 = vand.u32 %v839, 4294901760
        %v986 = vsub.f32 %v839, %v985
        %987 = vmatpush.xpose.msra.mxu0 %v986
        %v988 = vand.u32 %v836, 4294901760
        %v989 = vsub.f32 %v836, %v988
        %990 = vmatpush.xpose.msra.mxu0 %v989
        %v991 = vand.u32 %v833, 4294901760
        %v992 = vsub.f32 %v833, %v991
        %993 = vmatpush.xpose.msra.mxu0 %v992
        %v994 = vand.u32 %v827, 4294901760
        %v995 = vsub.f32 %v827, %v994
        %996 = vmatmul.f32.gmra.mxu0 %v995
        %v997 = vpop.f32.mrf.mxu0
        %v998 = vadd.f32 %v956, %v997
        %v999 = vand.u32 %v830, 4294901760
        %v1000 = vsub.f32 %v830, %v999
        %1001 = vmatmul.f32.gmra.mxu0 %v1000
        %v1002 = vpop.f32.mrf.mxu0
        %v1003 = vadd.f32 %v960, %v1002
        %1004 = vdwg.mxu0
        %1005 = vmatpush.xpose.msra.mxu0 0.0
        %1006 = vmatpush.xpose.msra.mxu0 0.0
        %1007 = vmatpush.xpose.msra.mxu0 0.0
        %1008 = vmatpush.xpose.msra.mxu0 0.0
        %1009 = vmatpush.xpose.msra.mxu0 0.0
        %1010 = vmatpush.xpose.msra.mxu0 0.0
        %1011 = vmatpush.xpose.msra.mxu0 0.0
        %1012 = vmatpush.xpose.msra.mxu0 0.0
        %v1013 = vand.u32 %v854, 4294901760
        %1014 = vmatpush.xpose.msra.mxu0 %v1013
        %v1015 = vand.u32 %v851, 4294901760
        %1016 = vmatpush.xpose.msra.mxu0 %v1015
        %v1017 = vand.u32 %v848, 4294901760
        %1018 = vmatpush.xpose.msra.mxu0 %v1017
        %v1019 = vand.u32 %v845, 4294901760
        %1020 = vmatpush.xpose.msra.mxu0 %v1019
        %v1021 = vand.u32 %v842, 4294901760
        %1022 = vmatpush.xpose.msra.mxu0 %v1021
        %v1023 = vand.u32 %v839, 4294901760
        %1024 = vmatpush.xpose.msra.mxu0 %v1023
        %v1025 = vand.u32 %v836, 4294901760
        %1026 = vmatpush.xpose.msra.mxu0 %v1025
        %v1027 = vand.u32 %v833, 4294901760
        %1028 = vmatpush.xpose.msra.mxu0 %v1027
        %v1029 = vand.u32 %v827, 4294901760
        %v1030 = vsub.f32 %v827, %v1029
        %v1031 = vand.u32 %v1030, 4294901760
        %1032 = vmatmul.f32.gmra.mxu0 %v1031
        %v1033 = vpop.f32.mrf.mxu0
        %v1034 = vadd.f32 %v998, %v1033
        %v1035 = vand.u32 %v830, 4294901760
        %v1036 = vsub.f32 %v830, %v1035
        %v1037 = vand.u32 %v1036, 4294901760
        %1038 = vmatmul.f32.gmra.mxu0 %v1037
        %v1039 = vpop.f32.mrf.mxu0
        %v1040 = vadd.f32 %v1003, %v1039
        %1041 = vdwg.mxu0
        %1042 = vmatpush.xpose.msra.mxu0 0.0
        %1043 = vmatpush.xpose.msra.mxu0 0.0
        %1044 = vmatpush.xpose.msra.mxu0 0.0
        %1045 = vmatpush.xpose.msra.mxu0 0.0
        %1046 = vmatpush.xpose.msra.mxu0 0.0
        %1047 = vmatpush.xpose.msra.mxu0 0.0
        %1048 = vmatpush.xpose.msra.mxu0 0.0
        %1049 = vmatpush.xpose.msra.mxu0 0.0
        %v1050 = vand.u32 %v854, 4294901760
        %v1051 = vsub.f32 %v854, %v1050
        %v1052 = vand.u32 %v1051, 4294901760
        %1053 = vmatpush.xpose.msra.mxu0 %v1052
        %v1054 = vand.u32 %v851, 4294901760
        %v1055 = vsub.f32 %v851, %v1054
        %v1056 = vand.u32 %v1055, 4294901760
        %1057 = vmatpush.xpose.msra.mxu0 %v1056
        %v1058 = vand.u32 %v848, 4294901760
        %v1059 = vsub.f32 %v848, %v1058
        %v1060 = vand.u32 %v1059, 4294901760
        %1061 = vmatpush.xpose.msra.mxu0 %v1060
        %v1062 = vand.u32 %v845, 4294901760
        %v1063 = vsub.f32 %v845, %v1062
        %v1064 = vand.u32 %v1063, 4294901760
        %1065 = vmatpush.xpose.msra.mxu0 %v1064
        %v1066 = vand.u32 %v842, 4294901760
        %v1067 = vsub.f32 %v842, %v1066
        %v1068 = vand.u32 %v1067, 4294901760
        %1069 = vmatpush.xpose.msra.mxu0 %v1068
        %v1070 = vand.u32 %v839, 4294901760
        %v1071 = vsub.f32 %v839, %v1070
        %v1072 = vand.u32 %v1071, 4294901760
        %1073 = vmatpush.xpose.msra.mxu0 %v1072
        %v1074 = vand.u32 %v836, 4294901760
        %v1075 = vsub.f32 %v836, %v1074
        %v1076 = vand.u32 %v1075, 4294901760
        %1077 = vmatpush.xpose.msra.mxu0 %v1076
        %v1078 = vand.u32 %v833, 4294901760
        %v1079 = vsub.f32 %v833, %v1078
        %v1080 = vand.u32 %v1079, 4294901760
        %1081 = vmatpush.xpose.msra.mxu0 %v1080
        %v1082 = vand.u32 %v827, 4294901760
        %1083 = vmatmul.f32.gmra.mxu0 %v1082
        %v1084 = vpop.f32.mrf.mxu0
        %v1085 = vadd.f32 %v1034, %v1084
        %v1086 = vand.u32 %v830, 4294901760
        %1087 = vmatmul.f32.gmra.mxu0 %v1086
        %v1088 = vpop.f32.mrf.mxu0
        %v1089 = vadd.f32 %v1040, %v1088
        %1090 = vdwg.mxu0
        %1091 = vmatpush.xpose.msra.mxu0 0.0
        %1092 = vmatpush.xpose.msra.mxu0 0.0
        %1093 = vmatpush.xpose.msra.mxu0 0.0
        %1094 = vmatpush.xpose.msra.mxu0 0.0
        %1095 = vmatpush.xpose.msra.mxu0 0.0
        %1096 = vmatpush.xpose.msra.mxu0 0.0
        %1097 = vmatpush.xpose.msra.mxu0 0.0
        %1098 = vmatpush.xpose.msra.mxu0 0.0
        %v1099 = vand.u32 %v854, 4294901760
        %1100 = vmatpush.xpose.msra.mxu0 %v1099
        %v1101 = vand.u32 %v851, 4294901760
        %1102 = vmatpush.xpose.msra.mxu0 %v1101
        %v1103 = vand.u32 %v848, 4294901760
        %1104 = vmatpush.xpose.msra.mxu0 %v1103
        %v1105 = vand.u32 %v845, 4294901760
        %1106 = vmatpush.xpose.msra.mxu0 %v1105
        %v1107 = vand.u32 %v842, 4294901760
        %1108 = vmatpush.xpose.msra.mxu0 %v1107
        %v1109 = vand.u32 %v839, 4294901760
        %1110 = vmatpush.xpose.msra.mxu0 %v1109
        %v1111 = vand.u32 %v836, 4294901760
        %1112 = vmatpush.xpose.msra.mxu0 %v1111
        %v1113 = vand.u32 %v833, 4294901760
        %1114 = vmatpush.xpose.msra.mxu0 %v1113
        %v1115 = vand.u32 %v827, 4294901760
        %1116 = vmatmul.f32.gmra.mxu0 %v1115
        %v1117 = vpop.f32.mrf.mxu0
        %v1118 = vadd.f32 %v1085, %v1117
        %v1119 = vand.u32 %v830, 4294901760
        %1120 = vmatmul.f32.gmra.mxu0 %v1119
        %v1121 = vpop.f32.mrf.mxu0
        %v1122 = vadd.f32 %v1089, %v1121
        %1123 = vdwg.mxu0
        %vm1124 = vcmask 523264
        %v1125 = vsel %vm1124, %v1118, -inf
        %1126 = vmax.xlane.f32.xlu0 %v1125
        %v1127 = vpop.xlane.xlu0 %1126
        %v1128 = vsel %vm1124, %v1122, -inf
        %1129 = vmax.xlane.f32.xlu0 %v1128
        %v1130 = vpop.xlane.xlu0 %1129
        %v1131 = vsub.f32 %v1118, %v1127
        %v1132 = vsub.f32 %v1122, %v1130
        %v1133 = vmul.f32 %v1131, 1.442695
        %v1134 = vpow.pop %v1133
        %v1135 = vmul.f32 %v1132, 1.442695
        %v1136 = vpow.pop %v1135
        %v1138 = vsel %vm1124, %v1134, 0
        %v1141 = vsel %vm1124, %v1136, 0
        %1143 = vmatpush.msra.mxu0 0.0
        %1144 = vmatpush.msra.mxu0 0.0
        %1145 = vmatpush.msra.mxu0 0.0
        %1146 = vmatpush.msra.mxu0 0.0
        %1147 = vmatpush.msra.mxu0 0.0
        %1148 = vmatpush.msra.mxu0 0.0
        %1149 = vmatpush.msra.mxu0 0.0
        %1150 = vmatpush.msra.mxu0 0.0
        %v1151 = vand.u32 %v808, 4294901760
        %1152 = vmatpush.msra.mxu0 %v1151
        %v1153 = vand.u32 %v807, 4294901760
        %1154 = vmatpush.msra.mxu0 %v1153
        %v1155 = vand.u32 %v806, 4294901760
        %1156 = vmatpush.msra.mxu0 %v1155
        %v1157 = vand.u32 %v805, 4294901760
        %1158 = vmatpush.msra.mxu0 %v1157
        %v1159 = vand.u32 %v804, 4294901760
        %1160 = vmatpush.msra.mxu0 %v1159
        %v1161 = vand.u32 %v803, 4294901760
        %1162 = vmatpush.msra.mxu0 %v1161
        %v1163 = vand.u32 %v802, 4294901760
        %1164 = vmatpush.msra.mxu0 %v1163
        %v1165 = vand.u32 %v801, 4294901760
        %1166 = vmatpush.msra.mxu0 %v1165
        %v1167 = vand.u32 %v1138, 4294901760
        %v1168 = vsub.f32 %v1138, %v1167
        %v1169 = vand.u32 %v1168, 4294901760
        %v1170 = vsub.f32 %v1168, %v1169
        %v1171 = vand.u32 %v1170, 4294901760
        %1172 = vmatmul.f32.gmra.mxu0 %v1171
        %v1173 = vpop.f32.mrf.mxu0
        %v1174 = vadd.f32 0.0, %v1173
        %v1175 = vand.u32 %v1141, 4294901760
        %v1176 = vsub.f32 %v1141, %v1175
        %v1177 = vand.u32 %v1176, 4294901760
        %v1178 = vsub.f32 %v1176, %v1177
        %v1179 = vand.u32 %v1178, 4294901760
        %1180 = vmatmul.f32.gmra.mxu0 %v1179
        %v1181 = vpop.f32.mrf.mxu0
        %v1182 = vadd.f32 0.0, %v1181
        %1183 = vdwg.mxu0
        %1184 = vmatpush.msra.mxu0 0.0
        %1185 = vmatpush.msra.mxu0 0.0
        %1186 = vmatpush.msra.mxu0 0.0
        %1187 = vmatpush.msra.mxu0 0.0
        %1188 = vmatpush.msra.mxu0 0.0
        %1189 = vmatpush.msra.mxu0 0.0
        %1190 = vmatpush.msra.mxu0 0.0
        %1191 = vmatpush.msra.mxu0 0.0
        %v1192 = vand.u32 %v808, 4294901760
        %v1193 = vsub.f32 %v808, %v1192
        %v1194 = vand.u32 %v1193, 4294901760
        %v1195 = vsub.f32 %v1193, %v1194
        %v1196 = vand.u32 %v1195, 4294901760
        %1197 = vmatpush.msra.mxu0 %v1196
        %v1198 = vand.u32 %v807, 4294901760
        %v1199 = vsub.f32 %v807, %v1198
        %v1200 = vand.u32 %v1199, 4294901760
        %v1201 = vsub.f32 %v1199, %v1200
        %v1202 = vand.u32 %v1201, 4294901760
        %1203 = vmatpush.msra.mxu0 %v1202
        %v1204 = vand.u32 %v806, 4294901760
        %v1205 = vsub.f32 %v806, %v1204
        %v1206 = vand.u32 %v1205, 4294901760
        %v1207 = vsub.f32 %v1205, %v1206
        %v1208 = vand.u32 %v1207, 4294901760
        %1209 = vmatpush.msra.mxu0 %v1208
        %v1210 = vand.u32 %v805, 4294901760
        %v1211 = vsub.f32 %v805, %v1210
        %v1212 = vand.u32 %v1211, 4294901760
        %v1213 = vsub.f32 %v1211, %v1212
        %v1214 = vand.u32 %v1213, 4294901760
        %1215 = vmatpush.msra.mxu0 %v1214
        %v1216 = vand.u32 %v804, 4294901760
        %v1217 = vsub.f32 %v804, %v1216
        %v1218 = vand.u32 %v1217, 4294901760
        %v1219 = vsub.f32 %v1217, %v1218
        %v1220 = vand.u32 %v1219, 4294901760
        %1221 = vmatpush.msra.mxu0 %v1220
        %v1222 = vand.u32 %v803, 4294901760
        %v1223 = vsub.f32 %v803, %v1222
        %v1224 = vand.u32 %v1223, 4294901760
        %v1225 = vsub.f32 %v1223, %v1224
        %v1226 = vand.u32 %v1225, 4294901760
        %1227 = vmatpush.msra.mxu0 %v1226
        %v1228 = vand.u32 %v802, 4294901760
        %v1229 = vsub.f32 %v802, %v1228
        %v1230 = vand.u32 %v1229, 4294901760
        %v1231 = vsub.f32 %v1229, %v1230
        %v1232 = vand.u32 %v1231, 4294901760
        %1233 = vmatpush.msra.mxu0 %v1232
        %v1234 = vand.u32 %v801, 4294901760
        %v1235 = vsub.f32 %v801, %v1234
        %v1236 = vand.u32 %v1235, 4294901760
        %v1237 = vsub.f32 %v1235, %v1236
        %v1238 = vand.u32 %v1237, 4294901760
        %1239 = vmatpush.msra.mxu0 %v1238
        %v1240 = vand.u32 %v1138, 4294901760
        %1241 = vmatmul.f32.gmra.mxu0 %v1240
        %v1242 = vpop.f32.mrf.mxu0
        %v1243 = vadd.f32 %v1174, %v1242
        %v1244 = vand.u32 %v1141, 4294901760
        %1245 = vmatmul.f32.gmra.mxu0 %v1244
        %v1246 = vpop.f32.mrf.mxu0
        %v1247 = vadd.f32 %v1182, %v1246
        %1248 = vdwg.mxu0
        %1249 = vmatpush.msra.mxu0 0.0
        %1250 = vmatpush.msra.mxu0 0.0
        %1251 = vmatpush.msra.mxu0 0.0
        %1252 = vmatpush.msra.mxu0 0.0
        %1253 = vmatpush.msra.mxu0 0.0
        %1254 = vmatpush.msra.mxu0 0.0
        %1255 = vmatpush.msra.mxu0 0.0
        %1256 = vmatpush.msra.mxu0 0.0
        %v1257 = vand.u32 %v808, 4294901760
        %v1258 = vsub.f32 %v808, %v1257
        %1259 = vmatpush.msra.mxu0 %v1258
        %v1260 = vand.u32 %v807, 4294901760
        %v1261 = vsub.f32 %v807, %v1260
        %1262 = vmatpush.msra.mxu0 %v1261
        %v1263 = vand.u32 %v806, 4294901760
        %v1264 = vsub.f32 %v806, %v1263
        %1265 = vmatpush.msra.mxu0 %v1264
        %v1266 = vand.u32 %v805, 4294901760
        %v1267 = vsub.f32 %v805, %v1266
        %1268 = vmatpush.msra.mxu0 %v1267
        %v1269 = vand.u32 %v804, 4294901760
        %v1270 = vsub.f32 %v804, %v1269
        %1271 = vmatpush.msra.mxu0 %v1270
        %v1272 = vand.u32 %v803, 4294901760
        %v1273 = vsub.f32 %v803, %v1272
        %1274 = vmatpush.msra.mxu0 %v1273
        %v1275 = vand.u32 %v802, 4294901760
        %v1276 = vsub.f32 %v802, %v1275
        %1277 = vmatpush.msra.mxu0 %v1276
        %v1278 = vand.u32 %v801, 4294901760
        %v1279 = vsub.f32 %v801, %v1278
        %1280 = vmatpush.msra.mxu0 %v1279
        %v1281 = vand.u32 %v1138, 4294901760
        %v1282 = vsub.f32 %v1138, %v1281
        %1283 = vmatmul.f32.gmra.mxu0 %v1282
        %v1284 = vpop.f32.mrf.mxu0
        %v1285 = vadd.f32 %v1243, %v1284
        %v1286 = vand.u32 %v1141, 4294901760
        %v1287 = vsub.f32 %v1141, %v1286
        %1288 = vmatmul.f32.gmra.mxu0 %v1287
        %v1289 = vpop.f32.mrf.mxu0
        %v1290 = vadd.f32 %v1247, %v1289
        %1291 = vdwg.mxu0
        %1292 = vmatpush.msra.mxu0 0.0
        %1293 = vmatpush.msra.mxu0 0.0
        %1294 = vmatpush.msra.mxu0 0.0
        %1295 = vmatpush.msra.mxu0 0.0
        %1296 = vmatpush.msra.mxu0 0.0
        %1297 = vmatpush.msra.mxu0 0.0
        %1298 = vmatpush.msra.mxu0 0.0
        %1299 = vmatpush.msra.mxu0 0.0
        %v1300 = vand.u32 %v808, 4294901760
        %1301 = vmatpush.msra.mxu0 %v1300
        %v1302 = vand.u32 %v807, 4294901760
        %1303 = vmatpush.msra.mxu0 %v1302
        %v1304 = vand.u32 %v806, 4294901760
        %1305 = vmatpush.msra.mxu0 %v1304
        %v1306 = vand.u32 %v805, 4294901760
        %1307 = vmatpush.msra.mxu0 %v1306
        %v1308 = vand.u32 %v804, 4294901760
        %1309 = vmatpush.msra.mxu0 %v1308
        %v1310 = vand.u32 %v803, 4294901760
        %1311 = vmatpush.msra.mxu0 %v1310
        %v1312 = vand.u32 %v802, 4294901760
        %1313 = vmatpush.msra.mxu0 %v1312
        %v1314 = vand.u32 %v801, 4294901760
        %1315 = vmatpush.msra.mxu0 %v1314
        %v1316 = vand.u32 %v1138, 4294901760
        %v1317 = vsub.f32 %v1138, %v1316
        %v1318 = vand.u32 %v1317, 4294901760
        %1319 = vmatmul.f32.gmra.mxu0 %v1318
        %v1320 = vpop.f32.mrf.mxu0
        %v1321 = vadd.f32 %v1285, %v1320
        %v1322 = vand.u32 %v1141, 4294901760
        %v1323 = vsub.f32 %v1141, %v1322
        %v1324 = vand.u32 %v1323, 4294901760
        %1325 = vmatmul.f32.gmra.mxu0 %v1324
        %v1326 = vpop.f32.mrf.mxu0
        %v1327 = vadd.f32 %v1290, %v1326
        %1328 = vdwg.mxu0
        %1329 = vmatpush.msra.mxu0 0.0
        %1330 = vmatpush.msra.mxu0 0.0
        %1331 = vmatpush.msra.mxu0 0.0
        %1332 = vmatpush.msra.mxu0 0.0
        %1333 = vmatpush.msra.mxu0 0.0
        %1334 = vmatpush.msra.mxu0 0.0
        %1335 = vmatpush.msra.mxu0 0.0
        %1336 = vmatpush.msra.mxu0 0.0
        %v1337 = vand.u32 %v808, 4294901760
        %v1338 = vsub.f32 %v808, %v1337
        %v1339 = vand.u32 %v1338, 4294901760
        %1340 = vmatpush.msra.mxu0 %v1339
        %v1341 = vand.u32 %v807, 4294901760
        %v1342 = vsub.f32 %v807, %v1341
        %v1343 = vand.u32 %v1342, 4294901760
        %1344 = vmatpush.msra.mxu0 %v1343
        %v1345 = vand.u32 %v806, 4294901760
        %v1346 = vsub.f32 %v806, %v1345
        %v1347 = vand.u32 %v1346, 4294901760
        %1348 = vmatpush.msra.mxu0 %v1347
        %v1349 = vand.u32 %v805, 4294901760
        %v1350 = vsub.f32 %v805, %v1349
        %v1351 = vand.u32 %v1350, 4294901760
        %1352 = vmatpush.msra.mxu0 %v1351
        %v1353 = vand.u32 %v804, 4294901760
        %v1354 = vsub.f32 %v804, %v1353
        %v1355 = vand.u32 %v1354, 4294901760
        %1356 = vmatpush.msra.mxu0 %v1355
        %v1357 = vand.u32 %v803, 4294901760
        %v1358 = vsub.f32 %v803, %v1357
        %v1359 = vand.u32 %v1358, 4294901760
        %1360 = vmatpush.msra.mxu0 %v1359
        %v1361 = vand.u32 %v802, 4294901760
        %v1362 = vsub.f32 %v802, %v1361
        %v1363 = vand.u32 %v1362, 4294901760
        %1364 = vmatpush.msra.mxu0 %v1363
        %v1365 = vand.u32 %v801, 4294901760
        %v1366 = vsub.f32 %v801, %v1365
        %v1367 = vand.u32 %v1366, 4294901760
        %1368 = vmatpush.msra.mxu0 %v1367
        %v1369 = vand.u32 %v1138, 4294901760
        %1370 = vmatmul.f32.gmra.mxu0 %v1369
        %v1371 = vpop.f32.mrf.mxu0
        %v1372 = vadd.f32 %v1321, %v1371
        %v1373 = vand.u32 %v1141, 4294901760
        %1374 = vmatmul.f32.gmra.mxu0 %v1373
        %v1375 = vpop.f32.mrf.mxu0
        %v1376 = vadd.f32 %v1327, %v1375
        %1377 = vdwg.mxu0
        %1378 = vmatpush.msra.mxu0 0.0
        %1379 = vmatpush.msra.mxu0 0.0
        %1380 = vmatpush.msra.mxu0 0.0
        %1381 = vmatpush.msra.mxu0 0.0
        %1382 = vmatpush.msra.mxu0 0.0
        %1383 = vmatpush.msra.mxu0 0.0
        %1384 = vmatpush.msra.mxu0 0.0
        %1385 = vmatpush.msra.mxu0 0.0
        %v1386 = vand.u32 %v808, 4294901760
        %1387 = vmatpush.msra.mxu0 %v1386
        %v1388 = vand.u32 %v807, 4294901760
        %1389 = vmatpush.msra.mxu0 %v1388
        %v1390 = vand.u32 %v806, 4294901760
        %1391 = vmatpush.msra.mxu0 %v1390
        %v1392 = vand.u32 %v805, 4294901760
        %1393 = vmatpush.msra.mxu0 %v1392
        %v1394 = vand.u32 %v804, 4294901760
        %1395 = vmatpush.msra.mxu0 %v1394
        %v1396 = vand.u32 %v803, 4294901760
        %1397 = vmatpush.msra.mxu0 %v1396
        %v1398 = vand.u32 %v802, 4294901760
        %1399 = vmatpush.msra.mxu0 %v1398
        %v1400 = vand.u32 %v801, 4294901760
        %1401 = vmatpush.msra.mxu0 %v1400
        %v1402 = vand.u32 %v1138, 4294901760
        %1403 = vmatmul.f32.gmra.mxu0 %v1402
        %v1404 = vpop.f32.mrf.mxu0
        %v1405 = vadd.f32 %v1372, %v1404
        %v1406 = vand.u32 %v1141, 4294901760
        %1407 = vmatmul.f32.gmra.mxu0 %v1406
        %v1408 = vpop.f32.mrf.mxu0
        %v1409 = vadd.f32 %v1376, %v1408
        %1410 = vdwg.mxu0
        %1411 = vmatpush.msra.mxu0 0.0
        %1412 = vmatpush.msra.mxu0 0.0
        %1413 = vmatpush.msra.mxu0 0.0
        %1414 = vmatpush.msra.mxu0 0.0
        %1415 = vmatpush.msra.mxu0 0.0
        %1416 = vmatpush.msra.mxu0 0.0
        %1417 = vmatpush.msra.mxu0 0.0
        %1418 = vmatpush.msra.mxu0 0.0
        %v1419 = vand.u32 %v824, 4294901760
        %1420 = vmatpush.msra.mxu0 %v1419
        %v1421 = vand.u32 %v823, 4294901760
        %1422 = vmatpush.msra.mxu0 %v1421
        %v1423 = vand.u32 %v822, 4294901760
        %1424 = vmatpush.msra.mxu0 %v1423
        %v1425 = vand.u32 %v821, 4294901760
        %1426 = vmatpush.msra.mxu0 %v1425
        %v1427 = vand.u32 %v820, 4294901760
        %1428 = vmatpush.msra.mxu0 %v1427
        %v1429 = vand.u32 %v819, 4294901760
        %1430 = vmatpush.msra.mxu0 %v1429
        %v1431 = vand.u32 %v818, 4294901760
        %1432 = vmatpush.msra.mxu0 %v1431
        %v1433 = vand.u32 %v817, 4294901760
        %1434 = vmatpush.msra.mxu0 %v1433
        %v1435 = vand.u32 %v1138, 4294901760
        %v1436 = vsub.f32 %v1138, %v1435
        %v1437 = vand.u32 %v1436, 4294901760
        %v1438 = vsub.f32 %v1436, %v1437
        %v1439 = vand.u32 %v1438, 4294901760
        %1440 = vmatmul.f32.gmra.mxu0 %v1439
        %v1441 = vpop.f32.mrf.mxu0
        %v1442 = vadd.f32 0.0, %v1441
        %v1443 = vand.u32 %v1141, 4294901760
        %v1444 = vsub.f32 %v1141, %v1443
        %v1445 = vand.u32 %v1444, 4294901760
        %v1446 = vsub.f32 %v1444, %v1445
        %v1447 = vand.u32 %v1446, 4294901760
        %1448 = vmatmul.f32.gmra.mxu0 %v1447
        %v1449 = vpop.f32.mrf.mxu0
        %v1450 = vadd.f32 0.0, %v1449
        %1451 = vdwg.mxu0
        %1452 = vmatpush.msra.mxu0 0.0
        %1453 = vmatpush.msra.mxu0 0.0
        %1454 = vmatpush.msra.mxu0 0.0
        %1455 = vmatpush.msra.mxu0 0.0
        %1456 = vmatpush.msra.mxu0 0.0
        %1457 = vmatpush.msra.mxu0 0.0
        %1458 = vmatpush.msra.mxu0 0.0
        %1459 = vmatpush.msra.mxu0 0.0
        %v1460 = vand.u32 %v824, 4294901760
        %v1461 = vsub.f32 %v824, %v1460
        %v1462 = vand.u32 %v1461, 4294901760
        %v1463 = vsub.f32 %v1461, %v1462
        %v1464 = vand.u32 %v1463, 4294901760
        %1465 = vmatpush.msra.mxu0 %v1464
        %v1466 = vand.u32 %v823, 4294901760
        %v1467 = vsub.f32 %v823, %v1466
        %v1468 = vand.u32 %v1467, 4294901760
        %v1469 = vsub.f32 %v1467, %v1468
        %v1470 = vand.u32 %v1469, 4294901760
        %1471 = vmatpush.msra.mxu0 %v1470
        %v1472 = vand.u32 %v822, 4294901760
        %v1473 = vsub.f32 %v822, %v1472
        %v1474 = vand.u32 %v1473, 4294901760
        %v1475 = vsub.f32 %v1473, %v1474
        %v1476 = vand.u32 %v1475, 4294901760
        %1477 = vmatpush.msra.mxu0 %v1476
        %v1478 = vand.u32 %v821, 4294901760
        %v1479 = vsub.f32 %v821, %v1478
        %v1480 = vand.u32 %v1479, 4294901760
        %v1481 = vsub.f32 %v1479, %v1480
        %v1482 = vand.u32 %v1481, 4294901760
        %1483 = vmatpush.msra.mxu0 %v1482
        %v1484 = vand.u32 %v820, 4294901760
        %v1485 = vsub.f32 %v820, %v1484
        %v1486 = vand.u32 %v1485, 4294901760
        %v1487 = vsub.f32 %v1485, %v1486
        %v1488 = vand.u32 %v1487, 4294901760
        %1489 = vmatpush.msra.mxu0 %v1488
        %v1490 = vand.u32 %v819, 4294901760
        %v1491 = vsub.f32 %v819, %v1490
        %v1492 = vand.u32 %v1491, 4294901760
        %v1493 = vsub.f32 %v1491, %v1492
        %v1494 = vand.u32 %v1493, 4294901760
        %1495 = vmatpush.msra.mxu0 %v1494
        %v1496 = vand.u32 %v818, 4294901760
        %v1497 = vsub.f32 %v818, %v1496
        %v1498 = vand.u32 %v1497, 4294901760
        %v1499 = vsub.f32 %v1497, %v1498
        %v1500 = vand.u32 %v1499, 4294901760
        %1501 = vmatpush.msra.mxu0 %v1500
        %v1502 = vand.u32 %v817, 4294901760
        %v1503 = vsub.f32 %v817, %v1502
        %v1504 = vand.u32 %v1503, 4294901760
        %v1505 = vsub.f32 %v1503, %v1504
        %v1506 = vand.u32 %v1505, 4294901760
        %1507 = vmatpush.msra.mxu0 %v1506
        %v1508 = vand.u32 %v1138, 4294901760
        %1509 = vmatmul.f32.gmra.mxu0 %v1508
        %v1510 = vpop.f32.mrf.mxu0
        %v1511 = vadd.f32 %v1442, %v1510
        %v1512 = vand.u32 %v1141, 4294901760
        %1513 = vmatmul.f32.gmra.mxu0 %v1512
        %v1514 = vpop.f32.mrf.mxu0
        %v1515 = vadd.f32 %v1450, %v1514
        %1516 = vdwg.mxu0
        %1517 = vmatpush.msra.mxu0 0.0
        %1518 = vmatpush.msra.mxu0 0.0
        %1519 = vmatpush.msra.mxu0 0.0
        %1520 = vmatpush.msra.mxu0 0.0
        %1521 = vmatpush.msra.mxu0 0.0
        %1522 = vmatpush.msra.mxu0 0.0
        %1523 = vmatpush.msra.mxu0 0.0
        %1524 = vmatpush.msra.mxu0 0.0
        %v1525 = vand.u32 %v824, 4294901760
        %v1526 = vsub.f32 %v824, %v1525
        %1527 = vmatpush.msra.mxu0 %v1526
        %v1528 = vand.u32 %v823, 4294901760
        %v1529 = vsub.f32 %v823, %v1528
        %1530 = vmatpush.msra.mxu0 %v1529
        %v1531 = vand.u32 %v822, 4294901760
        %v1532 = vsub.f32 %v822, %v1531
        %1533 = vmatpush.msra.mxu0 %v1532
        %v1534 = vand.u32 %v821, 4294901760
        %v1535 = vsub.f32 %v821, %v1534
        %1536 = vmatpush.msra.mxu0 %v1535
        %v1537 = vand.u32 %v820, 4294901760
        %v1538 = vsub.f32 %v820, %v1537
        %1539 = vmatpush.msra.mxu0 %v1538
        %v1540 = vand.u32 %v819, 4294901760
        %v1541 = vsub.f32 %v819, %v1540
        %1542 = vmatpush.msra.mxu0 %v1541
        %v1543 = vand.u32 %v818, 4294901760
        %v1544 = vsub.f32 %v818, %v1543
        %1545 = vmatpush.msra.mxu0 %v1544
        %v1546 = vand.u32 %v817, 4294901760
        %v1547 = vsub.f32 %v817, %v1546
        %1548 = vmatpush.msra.mxu0 %v1547
        %v1549 = vand.u32 %v1138, 4294901760
        %v1550 = vsub.f32 %v1138, %v1549
        %1551 = vmatmul.f32.gmra.mxu0 %v1550
        %v1552 = vpop.f32.mrf.mxu0
        %v1553 = vadd.f32 %v1511, %v1552
        %v1554 = vand.u32 %v1141, 4294901760
        %v1555 = vsub.f32 %v1141, %v1554
        %1556 = vmatmul.f32.gmra.mxu0 %v1555
        %v1557 = vpop.f32.mrf.mxu0
        %v1558 = vadd.f32 %v1515, %v1557
        %1559 = vdwg.mxu0
        %1560 = vmatpush.msra.mxu0 0.0
        %1561 = vmatpush.msra.mxu0 0.0
        %1562 = vmatpush.msra.mxu0 0.0
        %1563 = vmatpush.msra.mxu0 0.0
        %1564 = vmatpush.msra.mxu0 0.0
        %1565 = vmatpush.msra.mxu0 0.0
        %1566 = vmatpush.msra.mxu0 0.0
        %1567 = vmatpush.msra.mxu0 0.0
        %v1568 = vand.u32 %v824, 4294901760
        %1569 = vmatpush.msra.mxu0 %v1568
        %v1570 = vand.u32 %v823, 4294901760
        %1571 = vmatpush.msra.mxu0 %v1570
        %v1572 = vand.u32 %v822, 4294901760
        %1573 = vmatpush.msra.mxu0 %v1572
        %v1574 = vand.u32 %v821, 4294901760
        %1575 = vmatpush.msra.mxu0 %v1574
        %v1576 = vand.u32 %v820, 4294901760
        %1577 = vmatpush.msra.mxu0 %v1576
        %v1578 = vand.u32 %v819, 4294901760
        %1579 = vmatpush.msra.mxu0 %v1578
        %v1580 = vand.u32 %v818, 4294901760
        %1581 = vmatpush.msra.mxu0 %v1580
        %v1582 = vand.u32 %v817, 4294901760
        %1583 = vmatpush.msra.mxu0 %v1582
        %v1584 = vand.u32 %v1138, 4294901760
        %v1585 = vsub.f32 %v1138, %v1584
        %v1586 = vand.u32 %v1585, 4294901760
        %1587 = vmatmul.f32.gmra.mxu0 %v1586
        %v1588 = vpop.f32.mrf.mxu0
        %v1589 = vadd.f32 %v1553, %v1588
        %v1590 = vand.u32 %v1141, 4294901760
        %v1591 = vsub.f32 %v1141, %v1590
        %v1592 = vand.u32 %v1591, 4294901760
        %1593 = vmatmul.f32.gmra.mxu0 %v1592
        %v1594 = vpop.f32.mrf.mxu0
        %v1595 = vadd.f32 %v1558, %v1594
        %1596 = vdwg.mxu0
        %1597 = vmatpush.msra.mxu0 0.0
        %1598 = vmatpush.msra.mxu0 0.0
        %1599 = vmatpush.msra.mxu0 0.0
        %1600 = vmatpush.msra.mxu0 0.0
        %1601 = vmatpush.msra.mxu0 0.0
        %1602 = vmatpush.msra.mxu0 0.0
        %1603 = vmatpush.msra.mxu0 0.0
        %1604 = vmatpush.msra.mxu0 0.0
        %v1605 = vand.u32 %v824, 4294901760
        %v1606 = vsub.f32 %v824, %v1605
        %v1607 = vand.u32 %v1606, 4294901760
        %1608 = vmatpush.msra.mxu0 %v1607
        %v1609 = vand.u32 %v823, 4294901760
        %v1610 = vsub.f32 %v823, %v1609
        %v1611 = vand.u32 %v1610, 4294901760
        %1612 = vmatpush.msra.mxu0 %v1611
        %v1613 = vand.u32 %v822, 4294901760
        %v1614 = vsub.f32 %v822, %v1613
        %v1615 = vand.u32 %v1614, 4294901760
        %1616 = vmatpush.msra.mxu0 %v1615
        %v1617 = vand.u32 %v821, 4294901760
        %v1618 = vsub.f32 %v821, %v1617
        %v1619 = vand.u32 %v1618, 4294901760
        %1620 = vmatpush.msra.mxu0 %v1619
        %v1621 = vand.u32 %v820, 4294901760
        %v1622 = vsub.f32 %v820, %v1621
        %v1623 = vand.u32 %v1622, 4294901760
        %1624 = vmatpush.msra.mxu0 %v1623
        %v1625 = vand.u32 %v819, 4294901760
        %v1626 = vsub.f32 %v819, %v1625
        %v1627 = vand.u32 %v1626, 4294901760
        %1628 = vmatpush.msra.mxu0 %v1627
        %v1629 = vand.u32 %v818, 4294901760
        %v1630 = vsub.f32 %v818, %v1629
        %v1631 = vand.u32 %v1630, 4294901760
        %1632 = vmatpush.msra.mxu0 %v1631
        %v1633 = vand.u32 %v817, 4294901760
        %v1634 = vsub.f32 %v817, %v1633
        %v1635 = vand.u32 %v1634, 4294901760
        %1636 = vmatpush.msra.mxu0 %v1635
        %v1637 = vand.u32 %v1138, 4294901760
        %1638 = vmatmul.f32.gmra.mxu0 %v1637
        %v1639 = vpop.f32.mrf.mxu0
        %v1640 = vadd.f32 %v1589, %v1639
        %v1641 = vand.u32 %v1141, 4294901760
        %1642 = vmatmul.f32.gmra.mxu0 %v1641
        %v1643 = vpop.f32.mrf.mxu0
        %v1644 = vadd.f32 %v1595, %v1643
        %1645 = vdwg.mxu0
        %1646 = vmatpush.msra.mxu0 0.0
        %1647 = vmatpush.msra.mxu0 0.0
        %1648 = vmatpush.msra.mxu0 0.0
        %1649 = vmatpush.msra.mxu0 0.0
        %1650 = vmatpush.msra.mxu0 0.0
        %1651 = vmatpush.msra.mxu0 0.0
        %1652 = vmatpush.msra.mxu0 0.0
        %1653 = vmatpush.msra.mxu0 0.0
        %v1654 = vand.u32 %v824, 4294901760
        %1655 = vmatpush.msra.mxu0 %v1654
        %v1656 = vand.u32 %v823, 4294901760
        %1657 = vmatpush.msra.mxu0 %v1656
        %v1658 = vand.u32 %v822, 4294901760
        %1659 = vmatpush.msra.mxu0 %v1658
        %v1660 = vand.u32 %v821, 4294901760
        %1661 = vmatpush.msra.mxu0 %v1660
        %v1662 = vand.u32 %v820, 4294901760
        %1663 = vmatpush.msra.mxu0 %v1662
        %v1664 = vand.u32 %v819, 4294901760
        %1665 = vmatpush.msra.mxu0 %v1664
        %v1666 = vand.u32 %v818, 4294901760
        %1667 = vmatpush.msra.mxu0 %v1666
        %v1668 = vand.u32 %v817, 4294901760
        %1669 = vmatpush.msra.mxu0 %v1668
        %v1670 = vand.u32 %v1138, 4294901760
        %1671 = vmatmul.f32.gmra.mxu0 %v1670
        %v1672 = vpop.f32.mrf.mxu0
        %v1673 = vadd.f32 %v1640, %v1672
        %v1674 = vand.u32 %v1141, 4294901760
        %1675 = vmatmul.f32.gmra.mxu0 %v1674
        %v1676 = vpop.f32.mrf.mxu0
        %v1677 = vadd.f32 %v1644, %v1676
        %1678 = vdwg.mxu0
        %v1679 = vrcp.pop %v1405
        %v1680 = vmul.f32 %v1405, %v1679
        %v1681 = vsub.f32 1.0, %v1680
        %v1682 = vmul.f32 %v1679, %v1681
        %v1683 = vadd.f32 %v1679, %v1682
        %vm1684 = vweird.f32 %v1405
        %vm1685 = vweird.f32 %v1679
        %vm1686 = vmor %vm1684, %vm1685
        %v1687 = vsel %vm1686, %v1679, %v1683
        %v1688 = vand.u32 2147483647, %v1405
        %vm1689 = vcmp.eq.f32.partialorder %v1688, 8.507059e+37
        %v1690 = vand.u32 %v1405, 2147483648
        %v1691 = vor.u32 1.1754944e-38, %v1690
        %v1692 = vsel %vm1689, %v1691, %v1687
        %v1693 = vmul.f32 %v1673, %v1692
        %v1694 = vrcp.pop %v1409
        %v1695 = vmul.f32 %v1409, %v1694
        %v1696 = vsub.f32 1.0, %v1695
        %v1697 = vmul.f32 %v1694, %v1696
        %v1698 = vadd.f32 %v1694, %v1697
        %vm1699 = vweird.f32 %v1409
        %vm1700 = vweird.f32 %v1694
        %vm1701 = vmor %vm1699, %vm1700
        %v1702 = vsel %vm1701, %v1694, %v1698
        %v1703 = vand.u32 2147483647, %v1409
        %vm1704 = vcmp.eq.f32.partialorder %v1703, 8.507059e+37
        %v1705 = vand.u32 %v1409, 2147483648
        %v1706 = vor.u32 1.1754944e-38, %v1705
        %v1707 = vsel %vm1704, %v1706, %v1702
        %v1708 = vmul.f32 %v1677, %v1707
        %v1709 = vadd.f32 %v441, %v1693
        %v1710 = vadd.f32 %v445, %v1708
        %v1711 = vld [vmem:[%s3] sm:$0xff]
        %v1712 = vld [vmem:[%s3 + $0x8] sm:$0xff]
        %v1713 = vld [vmem:[%s3 + $0x10] sm:$0xff]
        %v1714 = vld [vmem:[%s3 + $0x18] sm:$0xff]
        %v1715 = vld [vmem:[%s4] sm:$0x1]
        %v1717 = vperm.slane %v1715, 0
        %v1720 = vsel %vm825, %v1709, 0
        %v1723 = vsel %vm825, %v1710, 0
        %1725 = vmatpush.msra.mxu0 0.0
        %1726 = vmatpush.msra.mxu0 0.0
        %1727 = vmatpush.msra.mxu0 0.0
        %1728 = vmatpush.msra.mxu0 0.0
        %1729 = vmatpush.msra.mxu0 0.0
        %1730 = vmatpush.msra.mxu0 0.0
        %1731 = vmatpush.msra.mxu0 0.0
        %1732 = vmatpush.msra.mxu0 0.0
        %1733 = vmatpush.msra.mxu0 0.0
        %1734 = vmatpush.msra.mxu0 0.0
        %1735 = vmatpush.msra.mxu0 0.0
        %1736 = vmatpush.msra.mxu0 0.0
        %v1737 = vand.u32 %v1714, 4294901760
        %1738 = vmatpush.msra.mxu0 %v1737
        %v1739 = vand.u32 %v1713, 4294901760
        %1740 = vmatpush.msra.mxu0 %v1739
        %v1741 = vand.u32 %v1712, 4294901760
        %1742 = vmatpush.msra.mxu0 %v1741
        %v1743 = vand.u32 %v1711, 4294901760
        %1744 = vmatpush.msra.mxu0 %v1743
        %v1745 = vand.u32 %v1720, 4294901760
        %v1746 = vsub.f32 %v1720, %v1745
        %v1747 = vand.u32 %v1746, 4294901760
        %v1748 = vsub.f32 %v1746, %v1747
        %v1749 = vand.u32 %v1748, 4294901760
        %1750 = vmatmul.f32.gmra.mxu0 %v1749
        %v1751 = vpop.f32.mrf.mxu0
        %v1752 = vadd.f32 %v1717, %v1751
        %v1753 = vand.u32 %v1723, 4294901760
        %v1754 = vsub.f32 %v1723, %v1753
        %v1755 = vand.u32 %v1754, 4294901760
        %v1756 = vsub.f32 %v1754, %v1755
        %v1757 = vand.u32 %v1756, 4294901760
        %1758 = vmatmul.f32.gmra.mxu0 %v1757
        %v1759 = vpop.f32.mrf.mxu0
        %v1760 = vadd.f32 %v1717, %v1759
        %1761 = vdwg.mxu0
        %1762 = vmatpush.msra.mxu0 0.0
        %1763 = vmatpush.msra.mxu0 0.0
        %1764 = vmatpush.msra.mxu0 0.0
        %1765 = vmatpush.msra.mxu0 0.0
        %1766 = vmatpush.msra.mxu0 0.0
        %1767 = vmatpush.msra.mxu0 0.0
        %1768 = vmatpush.msra.mxu0 0.0
        %1769 = vmatpush.msra.mxu0 0.0
        %1770 = vmatpush.msra.mxu0 0.0
        %1771 = vmatpush.msra.mxu0 0.0
        %1772 = vmatpush.msra.mxu0 0.0
        %1773 = vmatpush.msra.mxu0 0.0
        %v1774 = vand.u32 %v1714, 4294901760
        %v1775 = vsub.f32 %v1714, %v1774
        %v1776 = vand.u32 %v1775, 4294901760
        %v1777 = vsub.f32 %v1775, %v1776
        %v1778 = vand.u32 %v1777, 4294901760
        %1779 = vmatpush.msra.mxu0 %v1778
        %v1780 = vand.u32 %v1713, 4294901760
        %v1781 = vsub.f32 %v1713, %v1780
        %v1782 = vand.u32 %v1781, 4294901760
        %v1783 = vsub.f32 %v1781, %v1782
        %v1784 = vand.u32 %v1783, 4294901760
        %1785 = vmatpush.msra.mxu0 %v1784
        %v1786 = vand.u32 %v1712, 4294901760
        %v1787 = vsub.f32 %v1712, %v1786
        %v1788 = vand.u32 %v1787, 4294901760
        %v1789 = vsub.f32 %v1787, %v1788
        %v1790 = vand.u32 %v1789, 4294901760
        %1791 = vmatpush.msra.mxu0 %v1790
        %v1792 = vand.u32 %v1711, 4294901760
        %v1793 = vsub.f32 %v1711, %v1792
        %v1794 = vand.u32 %v1793, 4294901760
        %v1795 = vsub.f32 %v1793, %v1794
        %v1796 = vand.u32 %v1795, 4294901760
        %1797 = vmatpush.msra.mxu0 %v1796
        %v1798 = vand.u32 %v1720, 4294901760
        %1799 = vmatmul.f32.gmra.mxu0 %v1798
        %v1800 = vpop.f32.mrf.mxu0
        %v1801 = vadd.f32 %v1752, %v1800
        %v1802 = vand.u32 %v1723, 4294901760
        %1803 = vmatmul.f32.gmra.mxu0 %v1802
        %v1804 = vpop.f32.mrf.mxu0
        %v1805 = vadd.f32 %v1760, %v1804
        %1806 = vdwg.mxu0
        %1807 = vmatpush.msra.mxu0 0.0
        %1808 = vmatpush.msra.mxu0 0.0
        %1809 = vmatpush.msra.mxu0 0.0
        %1810 = vmatpush.msra.mxu0 0.0
        %1811 = vmatpush.msra.mxu0 0.0
        %1812 = vmatpush.msra.mxu0 0.0
        %1813 = vmatpush.msra.mxu0 0.0
        %1814 = vmatpush.msra.mxu0 0.0
        %1815 = vmatpush.msra.mxu0 0.0
        %1816 = vmatpush.msra.mxu0 0.0
        %1817 = vmatpush.msra.mxu0 0.0
        %1818 = vmatpush.msra.mxu0 0.0
        %v1819 = vand.u32 %v1714, 4294901760
        %v1820 = vsub.f32 %v1714, %v1819
        %1821 = vmatpush.msra.mxu0 %v1820
        %v1822 = vand.u32 %v1713, 4294901760
        %v1823 = vsub.f32 %v1713, %v1822
        %1824 = vmatpush.msra.mxu0 %v1823
        %v1825 = vand.u32 %v1712, 4294901760
        %v1826 = vsub.f32 %v1712, %v1825
        %1827 = vmatpush.msra.mxu0 %v1826
        %v1828 = vand.u32 %v1711, 4294901760
        %v1829 = vsub.f32 %v1711, %v1828
        %1830 = vmatpush.msra.mxu0 %v1829
        %v1831 = vand.u32 %v1720, 4294901760
        %v1832 = vsub.f32 %v1720, %v1831
        %1833 = vmatmul.f32.gmra.mxu0 %v1832
        %v1834 = vpop.f32.mrf.mxu0
        %v1835 = vadd.f32 %v1801, %v1834
        %v1836 = vand.u32 %v1723, 4294901760
        %v1837 = vsub.f32 %v1723, %v1836
        %1838 = vmatmul.f32.gmra.mxu0 %v1837
        %v1839 = vpop.f32.mrf.mxu0
        %v1840 = vadd.f32 %v1805, %v1839
        %1841 = vdwg.mxu0
        %1842 = vmatpush.msra.mxu0 0.0
        %1843 = vmatpush.msra.mxu0 0.0
        %1844 = vmatpush.msra.mxu0 0.0
        %1845 = vmatpush.msra.mxu0 0.0
        %1846 = vmatpush.msra.mxu0 0.0
        %1847 = vmatpush.msra.mxu0 0.0
        %1848 = vmatpush.msra.mxu0 0.0
        %1849 = vmatpush.msra.mxu0 0.0
        %1850 = vmatpush.msra.mxu0 0.0
        %1851 = vmatpush.msra.mxu0 0.0
        %1852 = vmatpush.msra.mxu0 0.0
        %1853 = vmatpush.msra.mxu0 0.0
        %v1854 = vand.u32 %v1714, 4294901760
        %1855 = vmatpush.msra.mxu0 %v1854
        %v1856 = vand.u32 %v1713, 4294901760
        %1857 = vmatpush.msra.mxu0 %v1856
        %v1858 = vand.u32 %v1712, 4294901760
        %1859 = vmatpush.msra.mxu0 %v1858
        %v1860 = vand.u32 %v1711, 4294901760
        %1861 = vmatpush.msra.mxu0 %v1860
        %v1862 = vand.u32 %v1720, 4294901760
        %v1863 = vsub.f32 %v1720, %v1862
        %v1864 = vand.u32 %v1863, 4294901760
        %1865 = vmatmul.f32.gmra.mxu0 %v1864
        %v1866 = vpop.f32.mrf.mxu0
        %v1867 = vadd.f32 %v1835, %v1866
        %v1868 = vand.u32 %v1723, 4294901760
        %v1869 = vsub.f32 %v1723, %v1868
        %v1870 = vand.u32 %v1869, 4294901760
        %1871 = vmatmul.f32.gmra.mxu0 %v1870
        %v1872 = vpop.f32.mrf.mxu0
        %v1873 = vadd.f32 %v1840, %v1872
        %1874 = vdwg.mxu0
        %1875 = vmatpush.msra.mxu0 0.0
        %1876 = vmatpush.msra.mxu0 0.0
        %1877 = vmatpush.msra.mxu0 0.0
        %1878 = vmatpush.msra.mxu0 0.0
        %1879 = vmatpush.msra.mxu0 0.0
        %1880 = vmatpush.msra.mxu0 0.0
        %1881 = vmatpush.msra.mxu0 0.0
        %1882 = vmatpush.msra.mxu0 0.0
        %1883 = vmatpush.msra.mxu0 0.0
        %1884 = vmatpush.msra.mxu0 0.0
        %1885 = vmatpush.msra.mxu0 0.0
        %1886 = vmatpush.msra.mxu0 0.0
        %v1887 = vand.u32 %v1714, 4294901760
        %v1888 = vsub.f32 %v1714, %v1887
        %v1889 = vand.u32 %v1888, 4294901760
        %1890 = vmatpush.msra.mxu0 %v1889
        %v1891 = vand.u32 %v1713, 4294901760
        %v1892 = vsub.f32 %v1713, %v1891
        %v1893 = vand.u32 %v1892, 4294901760
        %1894 = vmatpush.msra.mxu0 %v1893
        %v1895 = vand.u32 %v1712, 4294901760
        %v1896 = vsub.f32 %v1712, %v1895
        %v1897 = vand.u32 %v1896, 4294901760
        %1898 = vmatpush.msra.mxu0 %v1897
        %v1899 = vand.u32 %v1711, 4294901760
        %v1900 = vsub.f32 %v1711, %v1899
        %v1901 = vand.u32 %v1900, 4294901760
        %1902 = vmatpush.msra.mxu0 %v1901
        %v1903 = vand.u32 %v1720, 4294901760
        %1904 = vmatmul.f32.gmra.mxu0 %v1903
        %v1905 = vpop.f32.mrf.mxu0
        %v1906 = vadd.f32 %v1867, %v1905
        %v1907 = vand.u32 %v1723, 4294901760
        %1908 = vmatmul.f32.gmra.mxu0 %v1907
        %v1909 = vpop.f32.mrf.mxu0
        %v1910 = vadd.f32 %v1873, %v1909
        %1911 = vdwg.mxu0
        %1912 = vmatpush.msra.mxu0 0.0
        %1913 = vmatpush.msra.mxu0 0.0
        %1914 = vmatpush.msra.mxu0 0.0
        %1915 = vmatpush.msra.mxu0 0.0
        %1916 = vmatpush.msra.mxu0 0.0
        %1917 = vmatpush.msra.mxu0 0.0
        %1918 = vmatpush.msra.mxu0 0.0
        %1919 = vmatpush.msra.mxu0 0.0
        %1920 = vmatpush.msra.mxu0 0.0
        %1921 = vmatpush.msra.mxu0 0.0
        %1922 = vmatpush.msra.mxu0 0.0
        %1923 = vmatpush.msra.mxu0 0.0
        %v1924 = vand.u32 %v1714, 4294901760
        %1925 = vmatpush.msra.mxu0 %v1924
        %v1926 = vand.u32 %v1713, 4294901760
        %1927 = vmatpush.msra.mxu0 %v1926
        %v1928 = vand.u32 %v1712, 4294901760
        %1929 = vmatpush.msra.mxu0 %v1928
        %v1930 = vand.u32 %v1711, 4294901760
        %1931 = vmatpush.msra.mxu0 %v1930
        %v1932 = vand.u32 %v1720, 4294901760
        %1933 = vmatmul.f32.gmra.mxu0 %v1932
        %v1934 = vpop.f32.mrf.mxu0
        %v1935 = vadd.f32 %v1906, %v1934
        %v1936 = vand.u32 %v1723, 4294901760
        %1937 = vmatmul.f32.gmra.mxu0 %v1936
        %v1938 = vpop.f32.mrf.mxu0
        %v1939 = vadd.f32 %v1910, %v1938
        %1940 = vdwg.mxu0
        %v1941 = vmax.f32 %v1935, 0.0
        %v1942 = vmax.f32 %v1939, 0.0
        %v1943 = vadd.f32 %v1709, %v1941
        %v1944 = vadd.f32 %v1710, %v1942
        %1945 = vst.msk [vmem:[%s244] sm:$0xff] %vm825, %v1943
        %1946 = vst.msk [vmem:[%s244 + $0x8] sm:$0xff] %vm825, %v1944
        %s1947 = sand.u32 %s159, 1
        %s1948 = scalar_lea.sflag [#allocation3], %s1947
        %s1949 = sand.u32 %s159, 1
        %s1950 = smul.addr %s1949, 16
        %s1951 = scalar_lea.vmem [#allocation2], %s1950
        // Predicated region
        $region45: #{tpu_custom_call.1} parent=43 // pred_check
          %p1952 = pneg %p169
        $region46: #{tpu_custom_call.1} parent=43 // pred_check_branch
          %1954 = sbr.rel (%p1952) target = $region48
        $region47: #{tpu_custom_call.1} parent=43 // pred_region
          %1956 = vsyncadd %s1948, 0
          %s1957 = smul.addr %s20, 2
          %s1958 = smul.addr %s1957, 8
          %s1959 = scalar_lea.hbm %s6, %s1958
          %s1960 = sshll.u32 %s1951, 4
          %s1961 = int_to_ptr.vmem [resolvable:$true] %s1960
          %s1962 = sshll.u32 %s1959, 4
          %s1963 = int_to_ptr.hbm [resolvable:$true] %s1962
          %1968 = dma.vmem_to_hbm [thread:$0]  %s1961, 256, %s1963, %s1948, 128, 128, 8
        $region48: #{tpu_custom_call.1} parent=43 // pred_fallthru
          _
      $region44: #{tpu_custom_call.1} parent=5 // pred_fallthru
        _
      %p1969 = scmp.le.s32.totalorder 2, %s15
      // Predicated region
      $region49: #{tpu_custom_call.1} parent=5 // pred_check
        %p1970 = pneg %p1969
      $region50: #{tpu_custom_call.1} parent=5 // pred_check_branch
        %1972 = sbr.rel (%p1970) target = $region52
      $region51: #{tpu_custom_call.1} parent=5 // pred_region
        %s1973 = ssub.s32 %s15, 2
        // Predicated region
        $region53: #{tpu_custom_call.1} parent=51 // pred_check
          %p1974 = pneg %p175
        $region54: #{tpu_custom_call.1} parent=51 // pred_check_branch
          %1976 = sbr.rel (%p1974) target = $region56
        $region55: #{tpu_custom_call.1} parent=51 // pred_region
          %s1977 = sand.u32 %s160, 1
          %s1978 = scalar_lea.sflag [#allocation3], %s1977
          %s1979 = sand.u32 %s160, 1
          %s1980 = smul.addr %s1979, 16
          %s1981 = scalar_lea.vmem [#allocation2], %s1980
          %1983 = dma.done %s1978, 256
        $region56: #{tpu_custom_call.1} parent=51 // pred_fallthru
          _
      $region52: #{tpu_custom_call.1} parent=5 // pred_fallthru
        _
    $region6: #{tpu_custom_call.1} parent=1 // loop_footer
      %s19 = sadd.s32 1, %s15
    $region7: #{tpu_custom_call.1} parent=1 // loop_footer_branch
      %14 = sbr.rel target = $region3
    $region8: #{tpu_custom_call.1} parent=1 // loop_exit
      _
    %1984 = vsyncpa [#allocation3], 1
    %s1985 = scalar_lea.sflag [#allocation3], 1
    %1986 = vsyncpa %s1985, 1

</llo_original>
